<compile_context>
chip_gen: v6e
topology: v6e:2x2x1
jax: 0.10.0
libtpu: 0.0.40
codegen_flags: <defaults>
</compile_context>

<pallas_src>
import jax
import jax.numpy as jnp
from jax.experimental import pallas as pl
from jax.experimental.pallas import tpu as pltpu


def mlp_kernel(x_ref, w1_ref, b1_ref, w2_ref, b2_ref, o_ref):
    # fc1: (tb, D_in) @ (D_in, H) on the MXU, f32 accumulation; bias add in f32.
    h = jnp.dot(x_ref[...], w1_ref[...], preferred_element_type=jnp.float32)
    h = h + b1_ref[...]
    # sigmoid: exp on the EUP; reciprocal also on the EUP (approx) instead of a VALU divide.
    h = pl.reciprocal(1.0 + jnp.exp(-h), approx=True)
    # fc2: (tb, H) @ (H, D_pad); D_pad is a multiple of 128 so the store is lane-dense.
    out = jnp.dot(h.astype(w2_ref.dtype), w2_ref[...], preferred_element_type=jnp.float32)
    out = out + b2_ref[...]
    o_ref[...] = out.astype(o_ref.dtype)


def _pick_tb(B, max_tile=512):
    """Batch tile: divides B, multiple of 8 (f32 sublanes), leaves >=2 grid steps,
    and stays small enough for the tightest scoped-VMEM budget (v7x / v5e)."""
    if B <= 16 or B % 8 != 0:
        return B
    best = 8
    cand = 8
    limit = min(max_tile, B // 2)
    while cand <= limit:
        if B % cand == 0:
            best = cand
        cand += 8
    return best


def two_layer_network(x, w1, b1, w2, b2, *, tb=None, mxu_dtype=jnp.bfloat16):
    """x:(B,D_in)  w1:(D_in,H)  b1:(1,H)|(H,)  w2:(H,D_out)  b2:(1,D_out)|(D_out,)"""
    B, D_in = x.shape
    H = w1.shape[1]
    D_out = w2.shape[1]
    out_dtype = x.dtype

    # Lane-pad the output dimension to a multiple of 128 (unmasked vst stores).
    D_pad = 128 * pl.cdiv(D_out, 128)
    w2_p = jnp.zeros((H, D_pad), dtype=w2.dtype).at[:, :D_out].set(w2)
    b2_p = jnp.zeros((1, D_pad), dtype=jnp.float32).at[:, :D_out].set(
        b2.reshape(1, -1).astype(jnp.float32))

    # MXU operands (optionally bf16); biases / epilogue stay f32.
    x_m = x.astype(mxu_dtype)
    w1_m = w1.astype(mxu_dtype)
    w2_m = w2_p.astype(mxu_dtype)
    b1_f = b1.reshape(1, -1).astype(jnp.float32)

    if tb is None:
        tb = _pick_tb(B)
    assert B % tb == 0
    grid = (B // tb,)

    itemsize = lambda a: jnp.dtype(a.dtype).itemsize
    cost = pl.CostEstimate(
        flops=2 * B * D_in * H + 2 * B * H * D_pad,
        transcendentals=B * H,
        bytes_accessed=(x_m.size * itemsize(x_m) + w1_m.size * itemsize(w1_m)
                        + w2_m.size * itemsize(w2_m) + b1_f.size * 4 + b2_p.size * 4
                        + B * D_pad * jnp.dtype(out_dtype).itemsize),
    )

    out_padded = pl.pallas_call(
        mlp_kernel,
        out_shape=jax.ShapeDtypeStruct((B, D_pad), out_dtype),
        grid_spec=pltpu.PrefetchScalarGridSpec(
            num_scalar_prefetch=0,
            grid=grid,
            in_specs=[
                pl.BlockSpec((tb, D_in), lambda i: (i, 0)),   # x tile (streamed per step)
                pl.BlockSpec((D_in, H), lambda i: (0, 0)),    # W1 (resident across grid)
                pl.BlockSpec((1, H), lambda i: (0, 0)),       # b1
                pl.BlockSpec((H, D_pad), lambda i: (0, 0)),   # W2 (lane-padded, resident)
                pl.BlockSpec((1, D_pad), lambda i: (0, 0)),   # b2 (lane-padded)
            ],
            out_specs=pl.BlockSpec((tb, D_pad), lambda i: (i, 0)),
        ),
        compiler_params=pltpu.CompilerParams(
            dimension_semantics=("parallel",),   # batch axis -> megacore on v7x
        ),
        cost_estimate=cost,
    )(x_m, w1_m, b1_f, w2_m, b2_p)

    return out_padded[:, :D_out]


if __name__ == "__main__":
    # NIST36-shaped model: D_in = 1024 (32x32 images), H = 64, D_out = 36 classes.
    # Batch 512 so the grid has >=2 steps (pipelining + v7x megacore) with tb=256.
    B, D_in, H, D_out = 512, 1024, 64, 36

    key = jax.random.PRNGKey(0)
    kx, kw1, kb1, kw2, kb2 = jax.random.split(key, 5)

    x = jax.random.normal(kx, (B, D_in), dtype=jnp.float32)
    w1 = jax.random.normal(kw1, (D_in, H), dtype=jnp.float32) * 0.02
    b1 = jax.random.normal(kb1, (1, H), dtype=jnp.float32) * 0.01
    w2 = jax.random.normal(kw2, (H, D_out), dtype=jnp.float32) * 0.02
    b2 = jax.random.normal(kb2, (1, D_out), dtype=jnp.float32) * 0.01

    # Pure-JAX reference (sigmoid MLP).
    ref = (1.0 / (1.0 + jnp.exp(-(x @ w1 + b1)))) @ w2 + b2

    # 1) f32-MXU path: tight correctness check (only the approx EUP reciprocal differs).
    out_f32 = jax.block_until_ready(
        two_layer_network(x, w1, b1, w2, b2, mxu_dtype=jnp.float32))
    assert out_f32.shape == (B, D_out)
    assert jnp.allclose(out_f32, ref, atol=1e-3, rtol=1e-3)

    # 2) bf16-MXU path (v6e/v7x perf recommendation): looser check vs f32 reference.
    out_bf16 = jax.block_until_ready(
        two_layer_network(x, w1, b1, w2, b2, mxu_dtype=jnp.bfloat16))
    assert out_bf16.shape == (B, D_out)
    assert jnp.allclose(out_bf16, ref, atol=3e-2, rtol=3e-2)

    print("KERNEL_OK")
</pallas_src>

<mosaic_0001>
module attributes {stable_mosaic.version = 11 : i64} {
  func.func @mlp_kernel(%arg0: i32, %arg1: memref<256x1024xf32, #tpu.memory_space<vmem>>, %arg2: memref<1024x64xf32, #tpu.memory_space<vmem>>, %arg3: memref<1x64xf32, #tpu.memory_space<vmem>>, %arg4: memref<64x128xf32, #tpu.memory_space<vmem>>, %arg5: memref<1x128xf32, #tpu.memory_space<vmem>>, %arg6: memref<256x128xf32, #tpu.memory_space<vmem>>) attributes {dimension_semantics = [#tpu.dimension_semantics<parallel>], iteration_bounds = array<i64: 2>, scalar_prefetch = 0 : i64, scratch_operands = 0 : i64, tpu.core_type = #tpu.core_type<tc>, window_params = [{transform_indices = @transform_0, window_bounds = array<i64: 256, 1024>}, {pipeline_mode = #tpu.pipeline_mode<synchronous>, transform_indices = @transform_1, window_bounds = array<i64: 1024, 64>}, {pipeline_mode = #tpu.pipeline_mode<synchronous>, transform_indices = @transform_2, window_bounds = array<i64: 1, 64>}, {pipeline_mode = #tpu.pipeline_mode<synchronous>, transform_indices = @transform_3, window_bounds = array<i64: 64, 128>}, {pipeline_mode = #tpu.pipeline_mode<synchronous>, transform_indices = @transform_4, window_bounds = array<i64: 1, 128>}, {transform_indices = @transform_5, window_bounds = array<i64: 256, 128>}]} {
    %c0 = arith.constant 0 : index
    %c0_0 = arith.constant 0 : index
    %0 = vector.load %arg1[%c0, %c0_0] : memref<256x1024xf32, #tpu.memory_space<vmem>>, vector<256x1024xf32>
    %c0_1 = arith.constant 0 : index
    %c0_2 = arith.constant 0 : index
    %1 = vector.load %arg2[%c0_1, %c0_2] : memref<1024x64xf32, #tpu.memory_space<vmem>>, vector<1024x64xf32>
    %cst = arith.constant dense<0.000000e+00> : vector<256x64xf32>
    %2 = tpu.matmul %0, %1, %cst {dimension_numbers = #tpu.dot_dimension_numbers<[1], [0], [0], [1], [0, 0, 1, 1], [], []>} : vector<256x1024xf32>, vector<1024x64xf32>, vector<256x64xf32> -> vector<256x64xf32>
    %c0_3 = arith.constant 0 : index
    %c0_4 = arith.constant 0 : index
    %3 = vector.load %arg3[%c0_3, %c0_4] : memref<1x64xf32, #tpu.memory_space<vmem>>, vector<1x64xf32>
    %4 = vector.broadcast %3 : vector<1x64xf32> to vector<256x64xf32>
    %5 = arith.addf %2, %4 : vector<256x64xf32>
    %cst_5 = arith.constant 0.000000e+00 : f32
    %6 = vector.broadcast %cst_5 : f32 to vector<256x64xf32>
    %7 = arith.subf %6, %5 : vector<256x64xf32>
    %8 = math.exp %7 : vector<256x64xf32>
    %cst_6 = arith.constant 1.000000e+00 : f32
    %9 = vector.broadcast %cst_6 : f32 to vector<256x64xf32>
    %10 = arith.addf %9, %8 : vector<256x64xf32>
    %11 = tpu.reciprocal %10 {approx = true} : vector<256x64xf32> -> vector<256x64xf32>
    %c0_7 = arith.constant 0 : index
    %c0_8 = arith.constant 0 : index
    %12 = vector.load %arg4[%c0_7, %c0_8] : memref<64x128xf32, #tpu.memory_space<vmem>>, vector<64x128xf32>
    %cst_9 = arith.constant dense<0.000000e+00> : vector<256x128xf32>
    %13 = tpu.matmul %11, %12, %cst_9 {dimension_numbers = #tpu.dot_dimension_numbers<[1], [0], [0], [1], [0, 0, 1, 1], [], []>} : vector<256x64xf32>, vector<64x128xf32>, vector<256x128xf32> -> vector<256x128xf32>
    %c0_10 = arith.constant 0 : index
    %c0_11 = arith.constant 0 : index
    %14 = vector.load %arg5[%c0_10, %c0_11] : memref<1x128xf32, #tpu.memory_space<vmem>>, vector<1x128xf32>
    %15 = vector.broadcast %14 : vector<1x128xf32> to vector<256x128xf32>
    %16 = arith.addf %13, %15 : vector<256x128xf32>
    %c0_12 = arith.constant 0 : index
    %c0_13 = arith.constant 0 : index
    %17 = vector.load %arg6[%c0_12, %c0_13] : memref<256x128xf32, #tpu.memory_space<vmem>>, vector<256x128xf32>
    tpu.vector_store %arg6[%c0_12, %c0_13], %16 {strides = array<i32>} : memref<256x128xf32, #tpu.memory_space<vmem>>, vector<256x128xf32>,
    return
  }
  func.func @transform_0(%arg0: i32) -> (i32, i32) {
    %c0_i32 = arith.constant 0 : i32
    %c0_i32_0 = arith.constant 0 : i32
    return %arg0, %c0_i32 : i32, i32
  }
  func.func @transform_1(%arg0: i32) -> (i32, i32) {
    %c0_i32 = arith.constant 0 : i32
    %c0_i32_0 = arith.constant 0 : i32
    %c0_i32_1 = arith.constant 0 : i32
    return %c0_i32, %c0_i32_0 : i32, i32
  }
  func.func @transform_2(%arg0: i32) -> (i32, i32) {
    %c0_i32 = arith.constant 0 : i32
    %c0_i32_0 = arith.constant 0 : i32
    %c0_i32_1 = arith.constant 0 : i32
    return %c0_i32, %c0_i32_0 : i32, i32
  }
  func.func @transform_3(%arg0: i32) -> (i32, i32) {
    %c0_i32 = arith.constant 0 : i32
    %c0_i32_0 = arith.constant 0 : i32
    %c0_i32_1 = arith.constant 0 : i32
    return %c0_i32, %c0_i32_0 : i32, i32
  }
  func.func @transform_4(%arg0: i32) -> (i32, i32) {
    %c0_i32 = arith.constant 0 : i32
    %c0_i32_0 = arith.constant 0 : i32
    %c0_i32_1 = arith.constant 0 : i32
    return %c0_i32, %c0_i32_0 : i32, i32
  }
  func.func @transform_5(%arg0: i32) -> (i32, i32) {
    %c0_i32 = arith.constant 0 : i32
    %c0_i32_0 = arith.constant 0 : i32
    return %arg0, %c0_i32 : i32, i32
  }
}

</mosaic_0001>

<llo_original>
// kernel: tpu_custom_call.1
$region0: #{tpu_custom_call.1}
  #allocation0 [shape = 'u32[]', space=smem, size = 0x4, offset = 0x4, fixed_abs, tag = 'smem constant byte address 0x4 - core index']
  #allocation1 [shape = 'u32[144,128]{1,0:T(1,128)}', space=vmem, size = 0x12000, scoped, tag = 'internal scratch']
  %s0 = inlined_call_operand.hbm [shape: f32[512,1024], index: 0, kind: input, shape index: {}]
  %s1 = inlined_call_operand.vmem [shape: f32[1024,64], index: 1, kind: input, shape index: {}]
  %s2 = inlined_call_operand.hbm [shape: f32[1,64], index: 2, kind: input, shape index: {}]
  %s3 = inlined_call_operand.hbm [shape: f32[64,128], index: 3, kind: input, shape index: {}]
  %s4 = inlined_call_operand.hbm [shape: f32[1,128], index: 4, kind: input, shape index: {}]
  %s5 = inlined_call_operand.hbm [shape: f32[512,128], index: 5, kind: output, shape index: {}]
  %s6 = sld [smem:[#allocation0]]
  $region69: #{tpu_custom_call.1} parent=0
    _
  %s8 = ssub.s32 1, %s6
  %s9 = scalar_select 0, %s8, %s6
  $region1: #{tpu_custom_call.1} parent=0
    #allocation2 [shape = 'u8[2097152]{0}', space=vmem, size = 0x200000, scoped, tag = 'input window, operand 0']
    #allocation3 [shape = 's32[2]{0}', space=sflag, size = 0x8, scoped, tag = 'scoped memory for tpu_custom_call.1']
    #allocation4 [shape = 's32[2]{0}', space=sflag, size = 0x8, scoped, tag = 'scoped memory for tpu_custom_call.1']
    #allocation5 [shape = 'u8[512]{0}', space=vmem, size = 0x400, scoped, tag = 'input window, operand 2, single buffered']
    #allocation6 [shape = 's32[1]{0}', space=sflag, size = 0x4, scoped, tag = 'scoped memory for tpu_custom_call.1']
    #allocation7 [shape = 'u8[32768]{0}', space=vmem, size = 0x8000, scoped, tag = 'input window, operand 3, single buffered']
    #allocation8 [shape = 'u8[512]{0}', space=vmem, size = 0x400, scoped, tag = 'input window, operand 4, single buffered']
    #allocation9 [shape = 's32[1]{0}', space=sflag, size = 0x4, scoped, tag = 'scoped memory for tpu_custom_call.1']
    #allocation10 [shape = 'u8[262144]{0}', space=vmem, size = 0x40000, scoped, tag = 'output window, operand 0']
    %10 = vsyncpa [#allocation3], 0
    %s11 = scalar_lea.sflag [#allocation3], 1
    %12 = vsyncpa %s11, 0
    %13 = vsyncpa [#allocation6], 0
    %14 = vsyncpa [#allocation9], 0
    %15 = vsyncpa [#allocation4], 0
    %s16 = scalar_lea.sflag [#allocation4], 1
    %17 = vsyncpa %s16, 0
    loop: start=0, step=1, limit=4
    $region2: #{tpu_custom_call.1} parent=1 // loop_pre_header
      _
    $region3: #{tpu_custom_call.1} parent=1 // loop_header
      %s19 = sphi 0, %s23
      %p20 = scmp.ge.s32.totalorder %s19, 4
      %s29 = sphi 0, %s31
      %s32 = sphi 0, %s29
      %s33 = sphi 0, %s32
      %s49 = sphi 0, %s33
      %s53 = sphi 0, %s53
      %s55 = sphi 0, %s53
      %s56 = sphi 0, %s55
      %s70 = sphi 0, %s56
      %s74 = sphi 0, %s74
      %s76 = sphi 0, %s74
      %s77 = sphi 0, %s76
      %s91 = sphi 0, %s77
      %s95 = sphi 0, %s95
      %s97 = sphi 0, %s95
      %s98 = sphi 0, %s97
      %s112 = sphi 0, %s98
      %s116 = sphi 0, %s116
      %s118 = sphi 0, %s116
      %s119 = sphi 0, %s118
      %s133 = sphi 0, %s119
      %s139 = sphi 0, %s141
      %s142 = sphi 0, %s139
      %s143 = sphi 0, %s142
      %s159 = sphi 0, %s143
    $region4: #{tpu_custom_call.1} parent=1 // loop_header_branch
      %22 = sbr.rel (%p20) target = $region8
    $region5: #{tpu_custom_call.1} parent=1 // loop_body
      %s24 = ssub.s32 %s19, 1
      %s25 = ssub.s32 %s19, 2
      %s26 = sadd.s32 %s19, 1
      %s27 = ssub.s32 %s19, %s26
      %p28 = scmp.eq.s32.totalorder %s27, 0
      %s30 = sadd.s32 %s29, 1
      %s31 = scalar_select %p28, %s29, %s30
      %p34 = pneg %p28
      %p35 = scmp.eq.s32.totalorder %s19, 1
      %p36 = por %p34, %p35
      %p37 = scmp.ne.s32.totalorder %s29, %s32
      %p38 = scmp.eq.s32.totalorder %s19, 0
      %p39 = por %p37, %p38
      %p40 = scmp.ne.s32.totalorder %s29, %s32
      %p41 = scmp.eq.s32.totalorder %s24, 1
      %p42 = por %p40, %p41
      %p43 = scmp.ne.s32.totalorder %s32, %s33
      %p44 = scmp.eq.s32.totalorder %s24, 0
      %p45 = por %p43, %p44
      %p46 = scmp.ne.s32.totalorder %s32, %s33
      %p47 = scmp.eq.s32.totalorder %s25, 1
      %p48 = por %p46, %p47
      %p50 = scmp.ne.s32.totalorder %s33, %s49
      %p51 = scmp.eq.s32.totalorder %s25, 0
      %p52 = por %p50, %p51
      %s54 = sadd.s32 %s53, 1
      %p57 = scmp.eq.s32.totalorder %s19, 1
      %p58 = scmp.ne.s32.totalorder %s53, %s55
      %p59 = scmp.eq.s32.totalorder %s19, 0
      %p60 = por %p58, %p59
      %p61 = scmp.ne.s32.totalorder %s53, %s55
      %p62 = scmp.eq.s32.totalorder %s24, 1
      %p63 = por %p61, %p62
      %p64 = scmp.ne.s32.totalorder %s55, %s56
      %p65 = scmp.eq.s32.totalorder %s24, 0
      %p66 = por %p64, %p65
      %p67 = scmp.ne.s32.totalorder %s55, %s56
      %p68 = scmp.eq.s32.totalorder %s25, 1
      %p69 = por %p67, %p68
      %p71 = scmp.ne.s32.totalorder %s56, %s70
      %p72 = scmp.eq.s32.totalorder %s25, 0
      %p73 = por %p71, %p72
      %s75 = sadd.s32 %s74, 1
      %p78 = scmp.eq.s32.totalorder %s19, 1
      %p79 = scmp.ne.s32.totalorder %s74, %s76
      %p80 = scmp.eq.s32.totalorder %s19, 0
      %p81 = por %p79, %p80
      %p82 = scmp.ne.s32.totalorder %s74, %s76
      %p83 = scmp.eq.s32.totalorder %s24, 1
      %p84 = por %p82, %p83
      %p85 = scmp.ne.s32.totalorder %s76, %s77
      %p86 = scmp.eq.s32.totalorder %s24, 0
      %p87 = por %p85, %p86
      %p88 = scmp.ne.s32.totalorder %s76, %s77
      %p89 = scmp.eq.s32.totalorder %s25, 1
      %p90 = por %p88, %p89
      %p92 = scmp.ne.s32.totalorder %s77, %s91
      %p93 = scmp.eq.s32.totalorder %s25, 0
      %p94 = por %p92, %p93
      %s96 = sadd.s32 %s95, 1
      %p99 = scmp.eq.s32.totalorder %s19, 1
      %p100 = scmp.ne.s32.totalorder %s95, %s97
      %p101 = scmp.eq.s32.totalorder %s19, 0
      %p102 = por %p100, %p101
      %p103 = scmp.ne.s32.totalorder %s95, %s97
      %p104 = scmp.eq.s32.totalorder %s24, 1
      %p105 = por %p103, %p104
      %p106 = scmp.ne.s32.totalorder %s97, %s98
      %p107 = scmp.eq.s32.totalorder %s24, 0
      %p108 = por %p106, %p107
      %p109 = scmp.ne.s32.totalorder %s97, %s98
      %p110 = scmp.eq.s32.totalorder %s25, 1
      %p111 = por %p109, %p110
      %p113 = scmp.ne.s32.totalorder %s98, %s112
      %p114 = scmp.eq.s32.totalorder %s25, 0
      %p115 = por %p113, %p114
      %s117 = sadd.s32 %s116, 1
      %p120 = scmp.eq.s32.totalorder %s19, 1
      %p121 = scmp.ne.s32.totalorder %s116, %s118
      %p122 = scmp.eq.s32.totalorder %s19, 0
      %p123 = por %p121, %p122
      %p124 = scmp.ne.s32.totalorder %s116, %s118
      %p125 = scmp.eq.s32.totalorder %s24, 1
      %p126 = por %p124, %p125
      %p127 = scmp.ne.s32.totalorder %s118, %s119
      %p128 = scmp.eq.s32.totalorder %s24, 0
      %p129 = por %p127, %p128
      %p130 = scmp.ne.s32.totalorder %s118, %s119
      %p131 = scmp.eq.s32.totalorder %s25, 1
      %p132 = por %p130, %p131
      %p134 = scmp.ne.s32.totalorder %s119, %s133
      %p135 = scmp.eq.s32.totalorder %s25, 0
      %p136 = por %p134, %p135
      %s137 = ssub.s32 %s19, %s26
      %p138 = scmp.eq.s32.totalorder %s137, 0
      %s140 = sadd.s32 %s139, 1
      %s141 = scalar_select %p138, %s139, %s140
      %p144 = pneg %p138
      %p145 = scmp.eq.s32.totalorder %s19, 1
      %p146 = por %p144, %p145
      %p147 = scmp.ne.s32.totalorder %s139, %s142
      %p148 = scmp.eq.s32.totalorder %s19, 0
      %p149 = por %p147, %p148
      %p150 = scmp.ne.s32.totalorder %s139, %s142
      %p151 = scmp.eq.s32.totalorder %s24, 1
      %p152 = por %p150, %p151
      %p153 = scmp.ne.s32.totalorder %s142, %s143
      %p154 = scmp.eq.s32.totalorder %s24, 0
      %p155 = por %p153, %p154
      %p156 = scmp.ne.s32.totalorder %s142, %s143
      %p157 = scmp.eq.s32.totalorder %s25, 1
      %p158 = por %p156, %p157
      %p160 = scmp.ne.s32.totalorder %s143, %s159
      %p161 = scmp.eq.s32.totalorder %s25, 0
      %p162 = por %p160, %p161
      %p163 = scmp.le.s32.totalorder 1, %s19
      %p164 = scmp.lt.s32.totalorder %s19, 3
      %p165 = pnand %p163, %p164
      %p166 = pneg %p165
      // Predicated region
      $region9: #{tpu_custom_call.1} parent=5 // pred_check
        _
      $region10: #{tpu_custom_call.1} parent=5 // pred_check_branch
        %168 = sbr.rel (%p165) target = $region12
      $region11: #{tpu_custom_call.1} parent=5 // pred_region
        %s169 = ssub.s32 %s19, 1
        // Predicated region
        $region13: #{tpu_custom_call.1} parent=11 // pred_check
          %p170 = pneg %p66
        $region14: #{tpu_custom_call.1} parent=11 // pred_check_branch
          %172 = sbr.rel (%p170) target = $region16
        $region15: #{tpu_custom_call.1} parent=11 // pred_region
          _
        $region16: #{tpu_custom_call.1} parent=11 // pred_fallthru
          _
        // Predicated region
        $region17: #{tpu_custom_call.1} parent=11 // pred_check
          %p173 = pneg %p87
        $region18: #{tpu_custom_call.1} parent=11 // pred_check_branch
          %175 = sbr.rel (%p173) target = $region20
        $region19: #{tpu_custom_call.1} parent=11 // pred_region
          %s177 = ssub.s32 16, 16
          %178 = vsyncadd [#allocation6], %s177
          %s180 = sshll.u32 [#allocation5], 4
          %s181 = int_to_ptr.vmem [resolvable:$true] %s180
          %183 = dma.hbm_to_vmem [thread:$0]  %s2, 16, %s181, [#allocation6]
        $region20: #{tpu_custom_call.1} parent=11 // pred_fallthru
          _
        // Predicated region
        $region21: #{tpu_custom_call.1} parent=11 // pred_check
          %p184 = pneg %p108
        $region22: #{tpu_custom_call.1} parent=11 // pred_check_branch
          %186 = sbr.rel (%p184) target = $region24
        $region23: #{tpu_custom_call.1} parent=11 // pred_region
          %s188 = ssub.s32 1024, 1024
          %189 = vsyncadd [#allocation6], %s188
          %s190 = sshll.u32 [#allocation7], 4
          %s191 = int_to_ptr.vmem [resolvable:$true] %s190
          %196 = dma.hbm_to_vmem [thread:$0]  %s3, 1024, %s191, [#allocation6], 128, 128, 8
        $region24: #{tpu_custom_call.1} parent=11 // pred_fallthru
          _
        // Predicated region
        $region25: #{tpu_custom_call.1} parent=11 // pred_check
          %p197 = pneg %p129
        $region26: #{tpu_custom_call.1} parent=11 // pred_check_branch
          %199 = sbr.rel (%p197) target = $region28
        $region27: #{tpu_custom_call.1} parent=11 // pred_region
          %s201 = ssub.s32 16, 16
          %202 = vsyncadd [#allocation9], %s201
          %s204 = sshll.u32 [#allocation8], 4
          %s205 = int_to_ptr.vmem [resolvable:$true] %s204
          %207 = dma.hbm_to_vmem [thread:$0]  %s4, 16, %s205, [#allocation9]
        $region28: #{tpu_custom_call.1} parent=11 // pred_fallthru
          _
      $region12: #{tpu_custom_call.1} parent=5 // pred_fallthru
        _
      %p208 = scmp.lt.s32.totalorder %s19, 2
      // Predicated region
      $region29: #{tpu_custom_call.1} parent=5 // pred_check
        %p209 = pneg %p208
      $region30: #{tpu_custom_call.1} parent=5 // pred_check_branch
        %211 = sbr.rel (%p209) target = $region32
      $region31: #{tpu_custom_call.1} parent=5 // pred_region
        // Predicated region
        $region33: #{tpu_custom_call.1} parent=31 // pred_check
          %p212 = pneg %p39
        $region34: #{tpu_custom_call.1} parent=31 // pred_check_branch
          %214 = sbr.rel (%p212) target = $region36
        $region35: #{tpu_custom_call.1} parent=31 // pred_region
          %s215 = sand.u32 %s29, 1
          %s216 = scalar_lea.sflag [#allocation3], %s215
          %s217 = sand.u32 %s29, 1
          %s218 = smul.addr %s217, 2048
          %s219 = scalar_lea.vmem [#allocation2], %s218
          %s220 = smul.u32 32, %s19
          %s222 = ssub.s32 32768, 32768
          %223 = vsyncadd %s216, %s222
          %s224 = smul.addr %s220, 8
          %s225 = smul.addr %s224, 128
          %s226 = scalar_lea.hbm %s0, %s225
          %s227 = sshll.u32 %s219, 4
          %s228 = int_to_ptr.vmem [resolvable:$true] %s227
          %233 = dma.hbm_to_vmem [thread:$0]  %s226, 32768, %s228, %s216, 1024, 1024, 64
        $region36: #{tpu_custom_call.1} parent=31 // pred_fallthru
          _
      $region32: #{tpu_custom_call.1} parent=5 // pred_fallthru
        _
      %p234 = scmp.le.s32.totalorder 1, %s19
      %p235 = scmp.lt.s32.totalorder %s19, 3
      %p236 = pnand %p234, %p235
      %p237 = pneg %p236
      // Predicated region
      $region37: #{tpu_custom_call.1} parent=5 // pred_check
        _
      $region38: #{tpu_custom_call.1} parent=5 // pred_check_branch
        %239 = sbr.rel (%p236) target = $region40
      $region39: #{tpu_custom_call.1} parent=5 // pred_region
        %s240 = ssub.s32 %s19, 1
        %s241 = sand.u32 %s32, 1
        %s242 = scalar_lea.sflag [#allocation3], %s241
        %s243 = sand.u32 %s32, 1
        %s244 = smul.addr %s243, 2048
        %s245 = scalar_lea.vmem [#allocation2], %s244
        // Predicated region
        $region41: #{tpu_custom_call.1} parent=39 // pred_check
          %p246 = pneg %p45
        $region42: #{tpu_custom_call.1} parent=39 // pred_check_branch
          %248 = sbr.rel (%p246) target = $region44
        $region43: #{tpu_custom_call.1} parent=39 // pred_region
          %249 = dma.done %s242, 32768
        $region44: #{tpu_custom_call.1} parent=39 // pred_fallthru
          _
        // Predicated region
        $region45: #{tpu_custom_call.1} parent=39 // pred_check
          %p250 = pneg %p87
        $region46: #{tpu_custom_call.1} parent=39 // pred_check_branch
          %252 = sbr.rel (%p250) target = $region48
        $region47: #{tpu_custom_call.1} parent=39 // pred_region
          %253 = dma.done [#allocation6], 16
        $region48: #{tpu_custom_call.1} parent=39 // pred_fallthru
          _
        // Predicated region
        $region49: #{tpu_custom_call.1} parent=39 // pred_check
          %p254 = pneg %p108
        $region50: #{tpu_custom_call.1} parent=39 // pred_check_branch
          %256 = sbr.rel (%p254) target = $region52
        $region51: #{tpu_custom_call.1} parent=39 // pred_region
          %257 = dma.done [#allocation6], 1024
        $region52: #{tpu_custom_call.1} parent=39 // pred_fallthru
          _
        // Predicated region
        $region53: #{tpu_custom_call.1} parent=39 // pred_check
          %p258 = pneg %p129
        $region54: #{tpu_custom_call.1} parent=39 // pred_check_branch
          %260 = sbr.rel (%p258) target = $region56
        $region55: #{tpu_custom_call.1} parent=39 // pred_region
          %261 = dma.done [#allocation9], 16
        $region56: #{tpu_custom_call.1} parent=39 // pred_fallthru
          _
        %s262 = sand.u32 %s32, 1
        %s263 = scalar_lea.sflag [#allocation3], %s262
        %s264 = sand.u32 %s32, 1
        %s265 = smul.addr %s264, 2048
        %s266 = scalar_lea.vmem [#allocation2], %s265
        %p267 = pneg %p45
        %p268 = pneg %p42
        %p269 = pneg %p66
        %p270 = pneg %p63
        %p271 = pneg %p87
        %p272 = pneg %p84
        %p273 = pneg %p108
        %p274 = pneg %p105
        %p275 = pneg %p129
        %p276 = pneg %p126
        %p277 = pneg %p155
        %p278 = pneg %p152
        %s279 = sand.u32 %s142, 1
        %s280 = scalar_lea.sflag [#allocation4], %s279
        %s281 = sand.u32 %s142, 1
        %s282 = smul.addr %s281, 256
        %s283 = scalar_lea.vmem [#allocation10], %s282
        %s284 = smul.u32 32, %s24
        %s285 = smul.u32 32, %s24
        %v286 = vld [vmem:[%s245] sm:$0xff]
        %v287 = vld [vmem:[%s245 + $0x8] sm:$0xff]
        %v288 = vld [vmem:[%s245 + $0x10] sm:$0xff]
        %v289 = vld [vmem:[%s245 + $0x18] sm:$0xff]
        %v290 = vld [vmem:[%s245 + $0x20] sm:$0xff]
        %v291 = vld [vmem:[%s245 + $0x28] sm:$0xff]
        %v292 = vld [vmem:[%s245 + $0x30] sm:$0xff]
        %v293 = vld [vmem:[%s245 + $0x38] sm:$0xff]
        %v294 = vld [vmem:[%s245 + $0x40] sm:$0xff]
        %v295 = vld [vmem:[%s245 + $0x48] sm:$0xff]
        %v296 = vld [vmem:[%s245 + $0x50] sm:$0xff]
        %v297 = vld [vmem:[%s245 + $0x58] sm:$0xff]
        %v298 = vld [vmem:[%s245 + $0x60] sm:$0xff]
        %v299 = vld [vmem:[%s245 + $0x68] sm:$0xff]
        %v300 = vld [vmem:[%s245 + $0x70] sm:$0xff]
        %v301 = vld [vmem:[%s245 + $0x78] sm:$0xff]
        %v302 = vld [vmem:[%s245 + $0x80] sm:$0xff]
        %v303 = vld [vmem:[%s245 + $0x88] sm:$0xff]
        %v304 = vld [vmem:[%s245 + $0x90] sm:$0xff]
        %v305 = vld [vmem:[%s245 + $0x98] sm:$0xff]
        %v306 = vld [vmem:[%s245 + $0xa0] sm:$0xff]
        %v307 = vld [vmem:[%s245 + $0xa8] sm:$0xff]
        %v308 = vld [vmem:[%s245 + $0xb0] sm:$0xff]
        %v309 = vld [vmem:[%s245 + $0xb8] sm:$0xff]
        %v310 = vld [vmem:[%s245 + $0xc0] sm:$0xff]
        %v311 = vld [vmem:[%s245 + $0xc8] sm:$0xff]
        %v312 = vld [vmem:[%s245 + $0xd0] sm:$0xff]
        %v313 = vld [vmem:[%s245 + $0xd8] sm:$0xff]
        %v314 = vld [vmem:[%s245 + $0xe0] sm:$0xff]
        %v315 = vld [vmem:[%s245 + $0xe8] sm:$0xff]
        %v316 = vld [vmem:[%s245 + $0xf0] sm:$0xff]
        %v317 = vld [vmem:[%s245 + $0xf8] sm:$0xff]
        %v318 = vld [vmem:[%s245 + $0x100] sm:$0xff]
        %v319 = vld [vmem:[%s245 + $0x108] sm:$0xff]
        %v320 = vld [vmem:[%s245 + $0x110] sm:$0xff]
        %v321 = vld [vmem:[%s245 + $0x118] sm:$0xff]
        %v322 = vld [vmem:[%s245 + $0x120] sm:$0xff]
        %v323 = vld [vmem:[%s245 + $0x128] sm:$0xff]
        %v324 = vld [vmem:[%s245 + $0x130] sm:$0xff]
        %v325 = vld [vmem:[%s245 + $0x138] sm:$0xff]
        %v326 = vld [vmem:[%s245 + $0x140] sm:$0xff]
        %v327 = vld [vmem:[%s245 + $0x148] sm:$0xff]
        %v328 = vld [vmem:[%s245 + $0x150] sm:$0xff]
        %v329 = vld [vmem:[%s245 + $0x158] sm:$0xff]
        %v330 = vld [vmem:[%s245 + $0x160] sm:$0xff]
        %v331 = vld [vmem:[%s245 + $0x168] sm:$0xff]
        %v332 = vld [vmem:[%s245 + $0x170] sm:$0xff]
        %v333 = vld [vmem:[%s245 + $0x178] sm:$0xff]
        %v334 = vld [vmem:[%s245 + $0x180] sm:$0xff]
        %v335 = vld [vmem:[%s245 + $0x188] sm:$0xff]
        %v336 = vld [vmem:[%s245 + $0x190] sm:$0xff]
        %v337 = vld [vmem:[%s245 + $0x198] sm:$0xff]
        %v338 = vld [vmem:[%s245 + $0x1a0] sm:$0xff]
        %v339 = vld [vmem:[%s245 + $0x1a8] sm:$0xff]
        %v340 = vld [vmem:[%s245 + $0x1b0] sm:$0xff]
        %v341 = vld [vmem:[%s245 + $0x1b8] sm:$0xff]
        %v342 = vld [vmem:[%s245 + $0x1c0] sm:$0xff]
        %v343 = vld [vmem:[%s245 + $0x1c8] sm:$0xff]
        %v344 = vld [vmem:[%s245 + $0x1d0] sm:$0xff]
        %v345 = vld [vmem:[%s245 + $0x1d8] sm:$0xff]
        %v346 = vld [vmem:[%s245 + $0x1e0] sm:$0xff]
        %v347 = vld [vmem:[%s245 + $0x1e8] sm:$0xff]
        %v348 = vld [vmem:[%s245 + $0x1f0] sm:$0xff]
        %v349 = vld [vmem:[%s245 + $0x1f8] sm:$0xff]
        %v350 = vld [vmem:[%s245 + $0x200] sm:$0xff]
        %v351 = vld [vmem:[%s245 + $0x208] sm:$0xff]
        %v352 = vld [vmem:[%s245 + $0x210] sm:$0xff]
        %v353 = vld [vmem:[%s245 + $0x218] sm:$0xff]
        %v354 = vld [vmem:[%s245 + $0x220] sm:$0xff]
        %v355 = vld [vmem:[%s245 + $0x228] sm:$0xff]
        %v356 = vld [vmem:[%s245 + $0x230] sm:$0xff]
        %v357 = vld [vmem:[%s245 + $0x238] sm:$0xff]
        %v358 = vld [vmem:[%s245 + $0x240] sm:$0xff]
        %v359 = vld [vmem:[%s245 + $0x248] sm:$0xff]
        %v360 = vld [vmem:[%s245 + $0x250] sm:$0xff]
        %v361 = vld [vmem:[%s245 + $0x258] sm:$0xff]
        %v362 = vld [vmem:[%s245 + $0x260] sm:$0xff]
        %v363 = vld [vmem:[%s245 + $0x268] sm:$0xff]
        %v364 = vld [vmem:[%s245 + $0x270] sm:$0xff]
        %v365 = vld [vmem:[%s245 + $0x278] sm:$0xff]
        %v366 = vld [vmem:[%s245 + $0x280] sm:$0xff]
        %v367 = vld [vmem:[%s245 + $0x288] sm:$0xff]
        %v368 = vld [vmem:[%s245 + $0x290] sm:$0xff]
        %v369 = vld [vmem:[%s245 + $0x298] sm:$0xff]
        %v370 = vld [vmem:[%s245 + $0x2a0] sm:$0xff]
        %v371 = vld [vmem:[%s245 + $0x2a8] sm:$0xff]
        %v372 = vld [vmem:[%s245 + $0x2b0] sm:$0xff]
        %v373 = vld [vmem:[%s245 + $0x2b8] sm:$0xff]
        %v374 = vld [vmem:[%s245 + $0x2c0] sm:$0xff]
        %v375 = vld [vmem:[%s245 + $0x2c8] sm:$0xff]
        %v376 = vld [vmem:[%s245 + $0x2d0] sm:$0xff]
        %v377 = vld [vmem:[%s245 + $0x2d8] sm:$0xff]
        %v378 = vld [vmem:[%s245 + $0x2e0] sm:$0xff]
        %v379 = vld [vmem:[%s245 + $0x2e8] sm:$0xff]
        %v380 = vld [vmem:[%s245 + $0x2f0] sm:$0xff]
        %v381 = vld [vmem:[%s245 + $0x2f8] sm:$0xff]
        %v382 = vld [vmem:[%s245 + $0x300] sm:$0xff]
        %v383 = vld [vmem:[%s245 + $0x308] sm:$0xff]
        %v384 = vld [vmem:[%s245 + $0x310] sm:$0xff]
        %v385 = vld [vmem:[%s245 + $0x318] sm:$0xff]
        %v386 = vld [vmem:[%s245 + $0x320] sm:$0xff]
        %v387 = vld [vmem:[%s245 + $0x328] sm:$0xff]
        %v388 = vld [vmem:[%s245 + $0x330] sm:$0xff]
        %v389 = vld [vmem:[%s245 + $0x338] sm:$0xff]
        %v390 = vld [vmem:[%s245 + $0x340] sm:$0xff]
        %v391 = vld [vmem:[%s245 + $0x348] sm:$0xff]
        %v392 = vld [vmem:[%s245 + $0x350] sm:$0xff]
        %v393 = vld [vmem:[%s245 + $0x358] sm:$0xff]
        %v394 = vld [vmem:[%s245 + $0x360] sm:$0xff]
        %v395 = vld [vmem:[%s245 + $0x368] sm:$0xff]
        %v396 = vld [vmem:[%s245 + $0x370] sm:$0xff]
        %v397 = vld [vmem:[%s245 + $0x378] sm:$0xff]
        %v398 = vld [vmem:[%s245 + $0x380] sm:$0xff]
        %v399 = vld [vmem:[%s245 + $0x388] sm:$0xff]
        %v400 = vld [vmem:[%s245 + $0x390] sm:$0xff]
        %v401 = vld [vmem:[%s245 + $0x398] sm:$0xff]
        %v402 = vld [vmem:[%s245 + $0x3a0] sm:$0xff]
        %v403 = vld [vmem:[%s245 + $0x3a8] sm:$0xff]
        %v404 = vld [vmem:[%s245 + $0x3b0] sm:$0xff]
        %v405 = vld [vmem:[%s245 + $0x3b8] sm:$0xff]
        %v406 = vld [vmem:[%s245 + $0x3c0] sm:$0xff]
        %v407 = vld [vmem:[%s245 + $0x3c8] sm:$0xff]
        %v408 = vld [vmem:[%s245 + $0x3d0] sm:$0xff]
        %v409 = vld [vmem:[%s245 + $0x3d8] sm:$0xff]
        %v410 = vld [vmem:[%s245 + $0x3e0] sm:$0xff]
        %v411 = vld [vmem:[%s245 + $0x3e8] sm:$0xff]
        %v412 = vld [vmem:[%s245 + $0x3f0] sm:$0xff]
        %v413 = vld [vmem:[%s245 + $0x3f8] sm:$0xff]
        %v414 = vld [vmem:[%s245 + $0x400] sm:$0xff]
        %v415 = vld [vmem:[%s245 + $0x408] sm:$0xff]
        %v416 = vld [vmem:[%s245 + $0x410] sm:$0xff]
        %v417 = vld [vmem:[%s245 + $0x418] sm:$0xff]
        %v418 = vld [vmem:[%s245 + $0x420] sm:$0xff]
        %v419 = vld [vmem:[%s245 + $0x428] sm:$0xff]
        %v420 = vld [vmem:[%s245 + $0x430] sm:$0xff]
        %v421 = vld [vmem:[%s245 + $0x438] sm:$0xff]
        %v422 = vld [vmem:[%s245 + $0x440] sm:$0xff]
        %v423 = vld [vmem:[%s245 + $0x448] sm:$0xff]
        %v424 = vld [vmem:[%s245 + $0x450] sm:$0xff]
        %v425 = vld [vmem:[%s245 + $0x458] sm:$0xff]
        %v426 = vld [vmem:[%s245 + $0x460] sm:$0xff]
        %v427 = vld [vmem:[%s245 + $0x468] sm:$0xff]
        %v428 = vld [vmem:[%s245 + $0x470] sm:$0xff]
        %v429 = vld [vmem:[%s245 + $0x478] sm:$0xff]
        %v430 = vld [vmem:[%s245 + $0x480] sm:$0xff]
        %v431 = vld [vmem:[%s245 + $0x488] sm:$0xff]
        %v432 = vld [vmem:[%s245 + $0x490] sm:$0xff]
        %v433 = vld [vmem:[%s245 + $0x498] sm:$0xff]
        %v434 = vld [vmem:[%s245 + $0x4a0] sm:$0xff]
        %v435 = vld [vmem:[%s245 + $0x4a8] sm:$0xff]
        %v436 = vld [vmem:[%s245 + $0x4b0] sm:$0xff]
        %v437 = vld [vmem:[%s245 + $0x4b8] sm:$0xff]
        %v438 = vld [vmem:[%s245 + $0x4c0] sm:$0xff]
        %v439 = vld [vmem:[%s245 + $0x4c8] sm:$0xff]
        %v440 = vld [vmem:[%s245 + $0x4d0] sm:$0xff]
        %v441 = vld [vmem:[%s245 + $0x4d8] sm:$0xff]
        %v442 = vld [vmem:[%s245 + $0x4e0] sm:$0xff]
        %v443 = vld [vmem:[%s245 + $0x4e8] sm:$0xff]
        %v444 = vld [vmem:[%s245 + $0x4f0] sm:$0xff]
        %v445 = vld [vmem:[%s245 + $0x4f8] sm:$0xff]
        %v446 = vld [vmem:[%s245 + $0x500] sm:$0xff]
        %v447 = vld [vmem:[%s245 + $0x508] sm:$0xff]
        %v448 = vld [vmem:[%s245 + $0x510] sm:$0xff]
        %v449 = vld [vmem:[%s245 + $0x518] sm:$0xff]
        %v450 = vld [vmem:[%s245 + $0x520] sm:$0xff]
        %v451 = vld [vmem:[%s245 + $0x528] sm:$0xff]
        %v452 = vld [vmem:[%s245 + $0x530] sm:$0xff]
        %v453 = vld [vmem:[%s245 + $0x538] sm:$0xff]
        %v454 = vld [vmem:[%s245 + $0x540] sm:$0xff]
        %v455 = vld [vmem:[%s245 + $0x548] sm:$0xff]
        %v456 = vld [vmem:[%s245 + $0x550] sm:$0xff]
        %v457 = vld [vmem:[%s245 + $0x558] sm:$0xff]
        %v458 = vld [vmem:[%s245 + $0x560] sm:$0xff]
        %v459 = vld [vmem:[%s245 + $0x568] sm:$0xff]
        %v460 = vld [vmem:[%s245 + $0x570] sm:$0xff]
        %v461 = vld [vmem:[%s245 + $0x578] sm:$0xff]
        %v462 = vld [vmem:[%s245 + $0x580] sm:$0xff]
        %v463 = vld [vmem:[%s245 + $0x588] sm:$0xff]
        %v464 = vld [vmem:[%s245 + $0x590] sm:$0xff]
        %v465 = vld [vmem:[%s245 + $0x598] sm:$0xff]
        %v466 = vld [vmem:[%s245 + $0x5a0] sm:$0xff]
        %v467 = vld [vmem:[%s245 + $0x5a8] sm:$0xff]
        %v468 = vld [vmem:[%s245 + $0x5b0] sm:$0xff]
        %v469 = vld [vmem:[%s245 + $0x5b8] sm:$0xff]
        %v470 = vld [vmem:[%s245 + $0x5c0] sm:$0xff]
        %v471 = vld [vmem:[%s245 + $0x5c8] sm:$0xff]
        %v472 = vld [vmem:[%s245 + $0x5d0] sm:$0xff]
        %v473 = vld [vmem:[%s245 + $0x5d8] sm:$0xff]
        %v474 = vld [vmem:[%s245 + $0x5e0] sm:$0xff]
        %v475 = vld [vmem:[%s245 + $0x5e8] sm:$0xff]
        %v476 = vld [vmem:[%s245 + $0x5f0] sm:$0xff]
        %v477 = vld [vmem:[%s245 + $0x5f8] sm:$0xff]
        %v478 = vld [vmem:[%s245 + $0x600] sm:$0xff]
        %v479 = vld [vmem:[%s245 + $0x608] sm:$0xff]
        %v480 = vld [vmem:[%s245 + $0x610] sm:$0xff]
        %v481 = vld [vmem:[%s245 + $0x618] sm:$0xff]
        %v482 = vld [vmem:[%s245 + $0x620] sm:$0xff]
        %v483 = vld [vmem:[%s245 + $0x628] sm:$0xff]
        %v484 = vld [vmem:[%s245 + $0x630] sm:$0xff]
        %v485 = vld [vmem:[%s245 + $0x638] sm:$0xff]
        %v486 = vld [vmem:[%s245 + $0x640] sm:$0xff]
        %v487 = vld [vmem:[%s245 + $0x648] sm:$0xff]
        %v488 = vld [vmem:[%s245 + $0x650] sm:$0xff]
        %v489 = vld [vmem:[%s245 + $0x658] sm:$0xff]
        %v490 = vld [vmem:[%s245 + $0x660] sm:$0xff]
        %v491 = vld [vmem:[%s245 + $0x668] sm:$0xff]
        %v492 = vld [vmem:[%s245 + $0x670] sm:$0xff]
        %v493 = vld [vmem:[%s245 + $0x678] sm:$0xff]
        %v494 = vld [vmem:[%s245 + $0x680] sm:$0xff]
        %v495 = vld [vmem:[%s245 + $0x688] sm:$0xff]
        %v496 = vld [vmem:[%s245 + $0x690] sm:$0xff]
        %v497 = vld [vmem:[%s245 + $0x698] sm:$0xff]
        %v498 = vld [vmem:[%s245 + $0x6a0] sm:$0xff]
        %v499 = vld [vmem:[%s245 + $0x6a8] sm:$0xff]
        %v500 = vld [vmem:[%s245 + $0x6b0] sm:$0xff]
        %v501 = vld [vmem:[%s245 + $0x6b8] sm:$0xff]
        %v502 = vld [vmem:[%s245 + $0x6c0] sm:$0xff]
        %v503 = vld [vmem:[%s245 + $0x6c8] sm:$0xff]
        %v504 = vld [vmem:[%s245 + $0x6d0] sm:$0xff]
        %v505 = vld [vmem:[%s245 + $0x6d8] sm:$0xff]
        %v506 = vld [vmem:[%s245 + $0x6e0] sm:$0xff]
        %v507 = vld [vmem:[%s245 + $0x6e8] sm:$0xff]
        %v508 = vld [vmem:[%s245 + $0x6f0] sm:$0xff]
        %v509 = vld [vmem:[%s245 + $0x6f8] sm:$0xff]
        %v510 = vld [vmem:[%s245 + $0x700] sm:$0xff]
        %v511 = vld [vmem:[%s245 + $0x708] sm:$0xff]
        %v512 = vld [vmem:[%s245 + $0x710] sm:$0xff]
        %v513 = vld [vmem:[%s245 + $0x718] sm:$0xff]
        %v514 = vld [vmem:[%s245 + $0x720] sm:$0xff]
        %v515 = vld [vmem:[%s245 + $0x728] sm:$0xff]
        %v516 = vld [vmem:[%s245 + $0x730] sm:$0xff]
        %v517 = vld [vmem:[%s245 + $0x738] sm:$0xff]
        %v518 = vld [vmem:[%s245 + $0x740] sm:$0xff]
        %v519 = vld [vmem:[%s245 + $0x748] sm:$0xff]
        %v520 = vld [vmem:[%s245 + $0x750] sm:$0xff]
        %v521 = vld [vmem:[%s245 + $0x758] sm:$0xff]
        %v522 = vld [vmem:[%s245 + $0x760] sm:$0xff]
        %v523 = vld [vmem:[%s245 + $0x768] sm:$0xff]
        %v524 = vld [vmem:[%s245 + $0x770] sm:$0xff]
        %v525 = vld [vmem:[%s245 + $0x778] sm:$0xff]
        %v526 = vld [vmem:[%s245 + $0x780] sm:$0xff]
        %v527 = vld [vmem:[%s245 + $0x788] sm:$0xff]
        %v528 = vld [vmem:[%s245 + $0x790] sm:$0xff]
        %v529 = vld [vmem:[%s245 + $0x798] sm:$0xff]
        %v530 = vld [vmem:[%s245 + $0x7a0] sm:$0xff]
        %v531 = vld [vmem:[%s245 + $0x7a8] sm:$0xff]
        %v532 = vld [vmem:[%s245 + $0x7b0] sm:$0xff]
        %v533 = vld [vmem:[%s245 + $0x7b8] sm:$0xff]
        %v534 = vld [vmem:[%s245 + $0x7c0] sm:$0xff]
        %v535 = vld [vmem:[%s245 + $0x7c8] sm:$0xff]
        %v536 = vld [vmem:[%s245 + $0x7d0] sm:$0xff]
        %v537 = vld [vmem:[%s245 + $0x7d8] sm:$0xff]
        %v538 = vld [vmem:[%s245 + $0x7e0] sm:$0xff]
        %v539 = vld [vmem:[%s245 + $0x7e8] sm:$0xff]
        %v540 = vld [vmem:[%s245 + $0x7f0] sm:$0xff]
        %v541 = vld [vmem:[%s245 + $0x7f8] sm:$0xff]
        %v542 = vld [vmem:[%s1] sm:$0xff]
        %v543 = vld [vmem:[%s1 + $0x8] sm:$0xff]
        %v544 = vld [vmem:[%s1 + $0x10] sm:$0xff]
        %v545 = vld [vmem:[%s1 + $0x18] sm:$0xff]
        %v546 = vld [vmem:[%s1 + $0x20] sm:$0xff]
        %v547 = vld [vmem:[%s1 + $0x28] sm:$0xff]
        %v548 = vld [vmem:[%s1 + $0x30] sm:$0xff]
        %v549 = vld [vmem:[%s1 + $0x38] sm:$0xff]
        %v550 = vld [vmem:[%s1 + $0x40] sm:$0xff]
        %v551 = vld [vmem:[%s1 + $0x48] sm:$0xff]
        %v552 = vld [vmem:[%s1 + $0x50] sm:$0xff]
        %v553 = vld [vmem:[%s1 + $0x58] sm:$0xff]
        %v554 = vld [vmem:[%s1 + $0x60] sm:$0xff]
        %v555 = vld [vmem:[%s1 + $0x68] sm:$0xff]
        %v556 = vld [vmem:[%s1 + $0x70] sm:$0xff]
        %v557 = vld [vmem:[%s1 + $0x78] sm:$0xff]
        %v558 = vld [vmem:[%s1 + $0x80] sm:$0xff]
        %v559 = vld [vmem:[%s1 + $0x88] sm:$0xff]
        %v560 = vld [vmem:[%s1 + $0x90] sm:$0xff]
        %v561 = vld [vmem:[%s1 + $0x98] sm:$0xff]
        %v562 = vld [vmem:[%s1 + $0xa0] sm:$0xff]
        %v563 = vld [vmem:[%s1 + $0xa8] sm:$0xff]
        %v564 = vld [vmem:[%s1 + $0xb0] sm:$0xff]
        %v565 = vld [vmem:[%s1 + $0xb8] sm:$0xff]
        %v566 = vld [vmem:[%s1 + $0xc0] sm:$0xff]
        %v567 = vld [vmem:[%s1 + $0xc8] sm:$0xff]
        %v568 = vld [vmem:[%s1 + $0xd0] sm:$0xff]
        %v569 = vld [vmem:[%s1 + $0xd8] sm:$0xff]
        %v570 = vld [vmem:[%s1 + $0xe0] sm:$0xff]
        %v571 = vld [vmem:[%s1 + $0xe8] sm:$0xff]
        %v572 = vld [vmem:[%s1 + $0xf0] sm:$0xff]
        %v573 = vld [vmem:[%s1 + $0xf8] sm:$0xff]
        %v574 = vld [vmem:[%s1 + $0x100] sm:$0xff]
        %v575 = vld [vmem:[%s1 + $0x108] sm:$0xff]
        %v576 = vld [vmem:[%s1 + $0x110] sm:$0xff]
        %v577 = vld [vmem:[%s1 + $0x118] sm:$0xff]
        %v578 = vld [vmem:[%s1 + $0x120] sm:$0xff]
        %v579 = vld [vmem:[%s1 + $0x128] sm:$0xff]
        %v580 = vld [vmem:[%s1 + $0x130] sm:$0xff]
        %v581 = vld [vmem:[%s1 + $0x138] sm:$0xff]
        %v582 = vld [vmem:[%s1 + $0x140] sm:$0xff]
        %v583 = vld [vmem:[%s1 + $0x148] sm:$0xff]
        %v584 = vld [vmem:[%s1 + $0x150] sm:$0xff]
        %v585 = vld [vmem:[%s1 + $0x158] sm:$0xff]
        %v586 = vld [vmem:[%s1 + $0x160] sm:$0xff]
        %v587 = vld [vmem:[%s1 + $0x168] sm:$0xff]
        %v588 = vld [vmem:[%s1 + $0x170] sm:$0xff]
        %v589 = vld [vmem:[%s1 + $0x178] sm:$0xff]
        %v590 = vld [vmem:[%s1 + $0x180] sm:$0xff]
        %v591 = vld [vmem:[%s1 + $0x188] sm:$0xff]
        %v592 = vld [vmem:[%s1 + $0x190] sm:$0xff]
        %v593 = vld [vmem:[%s1 + $0x198] sm:$0xff]
        %v594 = vld [vmem:[%s1 + $0x1a0] sm:$0xff]
        %v595 = vld [vmem:[%s1 + $0x1a8] sm:$0xff]
        %v596 = vld [vmem:[%s1 + $0x1b0] sm:$0xff]
        %v597 = vld [vmem:[%s1 + $0x1b8] sm:$0xff]
        %v598 = vld [vmem:[%s1 + $0x1c0] sm:$0xff]
        %v599 = vld [vmem:[%s1 + $0x1c8] sm:$0xff]
        %v600 = vld [vmem:[%s1 + $0x1d0] sm:$0xff]
        %v601 = vld [vmem:[%s1 + $0x1d8] sm:$0xff]
        %v602 = vld [vmem:[%s1 + $0x1e0] sm:$0xff]
        %v603 = vld [vmem:[%s1 + $0x1e8] sm:$0xff]
        %v604 = vld [vmem:[%s1 + $0x1f0] sm:$0xff]
        %v605 = vld [vmem:[%s1 + $0x1f8] sm:$0xff]
        %v606 = vld [vmem:[%s1 + $0x200] sm:$0xff]
        %v607 = vld [vmem:[%s1 + $0x208] sm:$0xff]
        %v608 = vld [vmem:[%s1 + $0x210] sm:$0xff]
        %v609 = vld [vmem:[%s1 + $0x218] sm:$0xff]
        %v610 = vld [vmem:[%s1 + $0x220] sm:$0xff]
        %v611 = vld [vmem:[%s1 + $0x228] sm:$0xff]
        %v612 = vld [vmem:[%s1 + $0x230] sm:$0xff]
        %v613 = vld [vmem:[%s1 + $0x238] sm:$0xff]
        %v614 = vld [vmem:[%s1 + $0x240] sm:$0xff]
        %v615 = vld [vmem:[%s1 + $0x248] sm:$0xff]
        %v616 = vld [vmem:[%s1 + $0x250] sm:$0xff]
        %v617 = vld [vmem:[%s1 + $0x258] sm:$0xff]
        %v618 = vld [vmem:[%s1 + $0x260] sm:$0xff]
        %v619 = vld [vmem:[%s1 + $0x268] sm:$0xff]
        %v620 = vld [vmem:[%s1 + $0x270] sm:$0xff]
        %v621 = vld [vmem:[%s1 + $0x278] sm:$0xff]
        %v622 = vld [vmem:[%s1 + $0x280] sm:$0xff]
        %v623 = vld [vmem:[%s1 + $0x288] sm:$0xff]
        %v624 = vld [vmem:[%s1 + $0x290] sm:$0xff]
        %v625 = vld [vmem:[%s1 + $0x298] sm:$0xff]
        %v626 = vld [vmem:[%s1 + $0x2a0] sm:$0xff]
        %v627 = vld [vmem:[%s1 + $0x2a8] sm:$0xff]
        %v628 = vld [vmem:[%s1 + $0x2b0] sm:$0xff]
        %v629 = vld [vmem:[%s1 + $0x2b8] sm:$0xff]
        %v630 = vld [vmem:[%s1 + $0x2c0] sm:$0xff]
        %v631 = vld [vmem:[%s1 + $0x2c8] sm:$0xff]
        %v632 = vld [vmem:[%s1 + $0x2d0] sm:$0xff]
        %v633 = vld [vmem:[%s1 + $0x2d8] sm:$0xff]
        %v634 = vld [vmem:[%s1 + $0x2e0] sm:$0xff]
        %v635 = vld [vmem:[%s1 + $0x2e8] sm:$0xff]
        %v636 = vld [vmem:[%s1 + $0x2f0] sm:$0xff]
        %v637 = vld [vmem:[%s1 + $0x2f8] sm:$0xff]
        %v638 = vld [vmem:[%s1 + $0x300] sm:$0xff]
        %v639 = vld [vmem:[%s1 + $0x308] sm:$0xff]
        %v640 = vld [vmem:[%s1 + $0x310] sm:$0xff]
        %v641 = vld [vmem:[%s1 + $0x318] sm:$0xff]
        %v642 = vld [vmem:[%s1 + $0x320] sm:$0xff]
        %v643 = vld [vmem:[%s1 + $0x328] sm:$0xff]
        %v644 = vld [vmem:[%s1 + $0x330] sm:$0xff]
        %v645 = vld [vmem:[%s1 + $0x338] sm:$0xff]
        %v646 = vld [vmem:[%s1 + $0x340] sm:$0xff]
        %v647 = vld [vmem:[%s1 + $0x348] sm:$0xff]
        %v648 = vld [vmem:[%s1 + $0x350] sm:$0xff]
        %v649 = vld [vmem:[%s1 + $0x358] sm:$0xff]
        %v650 = vld [vmem:[%s1 + $0x360] sm:$0xff]
        %v651 = vld [vmem:[%s1 + $0x368] sm:$0xff]
        %v652 = vld [vmem:[%s1 + $0x370] sm:$0xff]
        %v653 = vld [vmem:[%s1 + $0x378] sm:$0xff]
        %v654 = vld [vmem:[%s1 + $0x380] sm:$0xff]
        %v655 = vld [vmem:[%s1 + $0x388] sm:$0xff]
        %v656 = vld [vmem:[%s1 + $0x390] sm:$0xff]
        %v657 = vld [vmem:[%s1 + $0x398] sm:$0xff]
        %v658 = vld [vmem:[%s1 + $0x3a0] sm:$0xff]
        %v659 = vld [vmem:[%s1 + $0x3a8] sm:$0xff]
        %v660 = vld [vmem:[%s1 + $0x3b0] sm:$0xff]
        %v661 = vld [vmem:[%s1 + $0x3b8] sm:$0xff]
        %v662 = vld [vmem:[%s1 + $0x3c0] sm:$0xff]
        %v663 = vld [vmem:[%s1 + $0x3c8] sm:$0xff]
        %v664 = vld [vmem:[%s1 + $0x3d0] sm:$0xff]
        %v665 = vld [vmem:[%s1 + $0x3d8] sm:$0xff]
        %v666 = vld [vmem:[%s1 + $0x3e0] sm:$0xff]
        %v667 = vld [vmem:[%s1 + $0x3e8] sm:$0xff]
        %v668 = vld [vmem:[%s1 + $0x3f0] sm:$0xff]
        %v669 = vld [vmem:[%s1 + $0x3f8] sm:$0xff]
        %v670 = vld [vmem:[#allocation5] sm:$0x1]
        %v672 = vlaneseq
        %v673 = vshrl.u32 %v672, 7
        %v674 = vsub.s32 0, %v673
        %v675 = vrot.slane %v670, %v674
        %677 = vmatprep.subr.mxu0 0.0
        %678 = vmatpush1.msra.mxu0 %v557
        %679 = vmatprep.subr.mxu0 0.0
        %680 = vmatpush1.msra.mxu0 %v556
        %681 = vmatprep.subr.mxu0 0.0
        %682 = vmatpush1.msra.mxu0 %v555
        %683 = vmatprep.subr.mxu0 0.0
        %684 = vmatpush1.msra.mxu0 %v554
        %685 = vmatprep.subr.mxu0 0.0
        %686 = vmatpush1.msra.mxu0 %v553
        %687 = vmatprep.subr.mxu0 0.0
        %688 = vmatpush1.msra.mxu0 %v552
        %689 = vmatprep.subr.mxu0 0.0
        %690 = vmatpush1.msra.mxu0 %v551
        %691 = vmatprep.subr.mxu0 0.0
        %692 = vmatpush1.msra.mxu0 %v550
        %693 = vmatprep.subr.mxu0 0.0
        %694 = vmatpush1.msra.mxu0 %v549
        %695 = vmatprep.subr.mxu0 0.0
        %696 = vmatpush1.msra.mxu0 %v548
        %697 = vmatprep.subr.mxu0 0.0
        %698 = vmatpush1.msra.mxu0 %v547
        %699 = vmatprep.subr.mxu0 0.0
        %700 = vmatpush1.msra.mxu0 %v546
        %701 = vmatprep.subr.mxu0 0.0
        %702 = vmatpush1.msra.mxu0 %v545
        %703 = vmatprep.subr.mxu0 0.0
        %704 = vmatpush1.msra.mxu0 %v544
        %705 = vmatprep.subr.mxu0 0.0
        %706 = vmatpush1.msra.mxu0 %v543
        %707 = vmatprep.subr.mxu0 0.0
        %708 = vmatpush1.msra.mxu0 %v542
        %709 = vmatprep.subr.mxu0 0.0
        %710 = vmatpush2.msra.mxu0 %v573
        %711 = vmatprep.subr.mxu0 0.0
        %712 = vmatpush2.msra.mxu0 %v572
        %713 = vmatprep.subr.mxu0 0.0
        %714 = vmatpush2.msra.mxu0 %v571
        %715 = vmatprep.subr.mxu0 0.0
        %716 = vmatpush2.msra.mxu0 %v570
        %717 = vmatprep.subr.mxu0 0.0
        %718 = vmatpush2.msra.mxu0 %v569
        %719 = vmatprep.subr.mxu0 0.0
        %720 = vmatpush2.msra.mxu0 %v568
        %721 = vmatprep.subr.mxu0 0.0
        %722 = vmatpush2.msra.mxu0 %v567
        %723 = vmatprep.subr.mxu0 0.0
        %724 = vmatpush2.msra.mxu0 %v566
        %725 = vmatprep.subr.mxu0 0.0
        %726 = vmatpush2.msra.mxu0 %v565
        %727 = vmatprep.subr.mxu0 0.0
        %728 = vmatpush2.msra.mxu0 %v564
        %729 = vmatprep.subr.mxu0 0.0
        %730 = vmatpush2.msra.mxu0 %v563
        %731 = vmatprep.subr.mxu0 0.0
        %732 = vmatpush2.msra.mxu0 %v562
        %733 = vmatprep.subr.mxu0 0.0
        %734 = vmatpush2.msra.mxu0 %v561
        %735 = vmatprep.subr.mxu0 0.0
        %736 = vmatpush2.msra.mxu0 %v560
        %737 = vmatprep.subr.mxu0 0.0
        %738 = vmatpush2.msra.mxu0 %v559
        %739 = vmatprep.subr.mxu0 0.0
        %740 = vmatpush2.msra.mxu0 %v558
        %741 = vmatprep.mubr.f32.mxu0 %v287
        %742 = vmatmul.mubr.f32.gmra.mxu0 %v286
        %v743 = vpop.f32.mrf.mxu0
        %v744 = vadd.f32 %v675, %v743
        %v745 = vpop.f32.mrf.mxu0
        %746 = vmatprep.mubr.f32.mxu0 %v295
        %747 = vmatmul.mubr.f32.gmra.mxu0 %v294
        %v748 = vpop.f32.mrf.mxu0
        %v749 = vadd.f32 %v675, %v748
        %v750 = vpop.f32.mrf.mxu0
        %751 = vmatprep.mubr.f32.mxu0 %v303
        %752 = vmatmul.mubr.f32.gmra.mxu0 %v302
        %v753 = vpop.f32.mrf.mxu0
        %v754 = vadd.f32 %v675, %v753
        %v755 = vpop.f32.mrf.mxu0
        %756 = vmatprep.mubr.f32.mxu0 %v311
        %757 = vmatmul.mubr.f32.gmra.mxu0 %v310
        %v758 = vpop.f32.mrf.mxu0
        %v759 = vadd.f32 %v675, %v758
        %v760 = vpop.f32.mrf.mxu0
        %761 = vmatprep.mubr.f32.mxu0 %v319
        %762 = vmatmul.mubr.f32.gmra.mxu0 %v318
        %v763 = vpop.f32.mrf.mxu0
        %v764 = vadd.f32 %v675, %v763
        %v765 = vpop.f32.mrf.mxu0
        %766 = vmatprep.mubr.f32.mxu0 %v327
        %767 = vmatmul.mubr.f32.gmra.mxu0 %v326
        %v768 = vpop.f32.mrf.mxu0
        %v769 = vadd.f32 %v675, %v768
        %v770 = vpop.f32.mrf.mxu0
        %771 = vmatprep.mubr.f32.mxu0 %v335
        %772 = vmatmul.mubr.f32.gmra.mxu0 %v334
        %v773 = vpop.f32.mrf.mxu0
        %v774 = vadd.f32 %v675, %v773
        %v775 = vpop.f32.mrf.mxu0
        %776 = vmatprep.mubr.f32.mxu0 %v343
        %777 = vmatmul.mubr.f32.gmra.mxu0 %v342
        %v778 = vpop.f32.mrf.mxu0
        %v779 = vadd.f32 %v675, %v778
        %v780 = vpop.f32.mrf.mxu0
        %781 = vmatprep.mubr.f32.mxu0 %v351
        %782 = vmatmul.mubr.f32.gmra.mxu0 %v350
        %v783 = vpop.f32.mrf.mxu0
        %v784 = vadd.f32 %v675, %v783
        %v785 = vpop.f32.mrf.mxu0
        %786 = vmatprep.mubr.f32.mxu0 %v359
        %787 = vmatmul.mubr.f32.gmra.mxu0 %v358
        %v788 = vpop.f32.mrf.mxu0
        %v789 = vadd.f32 %v675, %v788
        %v790 = vpop.f32.mrf.mxu0
        %791 = vmatprep.mubr.f32.mxu0 %v367
        %792 = vmatmul.mubr.f32.gmra.mxu0 %v366
        %v793 = vpop.f32.mrf.mxu0
        %v794 = vadd.f32 %v675, %v793
        %v795 = vpop.f32.mrf.mxu0
        %796 = vmatprep.mubr.f32.mxu0 %v375
        %797 = vmatmul.mubr.f32.gmra.mxu0 %v374
        %v798 = vpop.f32.mrf.mxu0
        %v799 = vadd.f32 %v675, %v798
        %v800 = vpop.f32.mrf.mxu0
        %801 = vmatprep.mubr.f32.mxu0 %v383
        %802 = vmatmul.mubr.f32.gmra.mxu0 %v382
        %v803 = vpop.f32.mrf.mxu0
        %v804 = vadd.f32 %v675, %v803
        %v805 = vpop.f32.mrf.mxu0
        %806 = vmatprep.mubr.f32.mxu0 %v391
        %807 = vmatmul.mubr.f32.gmra.mxu0 %v390
        %v808 = vpop.f32.mrf.mxu0
        %v809 = vadd.f32 %v675, %v808
        %v810 = vpop.f32.mrf.mxu0
        %811 = vmatprep.mubr.f32.mxu0 %v399
        %812 = vmatmul.mubr.f32.gmra.mxu0 %v398
        %v813 = vpop.f32.mrf.mxu0
        %v814 = vadd.f32 %v675, %v813
        %v815 = vpop.f32.mrf.mxu0
        %816 = vmatprep.mubr.f32.mxu0 %v407
        %817 = vmatmul.mubr.f32.gmra.mxu0 %v406
        %v818 = vpop.f32.mrf.mxu0
        %v819 = vadd.f32 %v675, %v818
        %v820 = vpop.f32.mrf.mxu0
        %821 = vmatprep.mubr.f32.mxu0 %v415
        %822 = vmatmul.mubr.f32.gmra.mxu0 %v414
        %v823 = vpop.f32.mrf.mxu0
        %v824 = vadd.f32 %v675, %v823
        %v825 = vpop.f32.mrf.mxu0
        %826 = vmatprep.mubr.f32.mxu0 %v423
        %827 = vmatmul.mubr.f32.gmra.mxu0 %v422
        %v828 = vpop.f32.mrf.mxu0
        %v829 = vadd.f32 %v675, %v828
        %v830 = vpop.f32.mrf.mxu0
        %831 = vmatprep.mubr.f32.mxu0 %v431
        %832 = vmatmul.mubr.f32.gmra.mxu0 %v430
        %v833 = vpop.f32.mrf.mxu0
        %v834 = vadd.f32 %v675, %v833
        %v835 = vpop.f32.mrf.mxu0
        %836 = vmatprep.mubr.f32.mxu0 %v439
        %837 = vmatmul.mubr.f32.gmra.mxu0 %v438
        %v838 = vpop.f32.mrf.mxu0
        %v839 = vadd.f32 %v675, %v838
        %v840 = vpop.f32.mrf.mxu0
        %841 = vmatprep.mubr.f32.mxu0 %v447
        %842 = vmatmul.mubr.f32.gmra.mxu0 %v446
        %v843 = vpop.f32.mrf.mxu0
        %v844 = vadd.f32 %v675, %v843
        %v845 = vpop.f32.mrf.mxu0
        %846 = vmatprep.mubr.f32.mxu0 %v455
        %847 = vmatmul.mubr.f32.gmra.mxu0 %v454
        %v848 = vpop.f32.mrf.mxu0
        %v849 = vadd.f32 %v675, %v848
        %v850 = vpop.f32.mrf.mxu0
        %851 = vmatprep.mubr.f32.mxu0 %v463
        %852 = vmatmul.mubr.f32.gmra.mxu0 %v462
        %v853 = vpop.f32.mrf.mxu0
        %v854 = vadd.f32 %v675, %v853
        %v855 = vpop.f32.mrf.mxu0
        %856 = vmatprep.mubr.f32.mxu0 %v471
        %857 = vmatmul.mubr.f32.gmra.mxu0 %v470
        %v858 = vpop.f32.mrf.mxu0
        %v859 = vadd.f32 %v675, %v858
        %v860 = vpop.f32.mrf.mxu0
        %861 = vmatprep.mubr.f32.mxu0 %v479
        %862 = vmatmul.mubr.f32.gmra.mxu0 %v478
        %v863 = vpop.f32.mrf.mxu0
        %v864 = vadd.f32 %v675, %v863
        %v865 = vpop.f32.mrf.mxu0
        %866 = vmatprep.mubr.f32.mxu0 %v487
        %867 = vmatmul.mubr.f32.gmra.mxu0 %v486
        %v868 = vpop.f32.mrf.mxu0
        %v869 = vadd.f32 %v675, %v868
        %v870 = vpop.f32.mrf.mxu0
        %871 = vmatprep.mubr.f32.mxu0 %v495
        %872 = vmatmul.mubr.f32.gmra.mxu0 %v494
        %v873 = vpop.f32.mrf.mxu0
        %v874 = vadd.f32 %v675, %v873
        %v875 = vpop.f32.mrf.mxu0
        %876 = vmatprep.mubr.f32.mxu0 %v503
        %877 = vmatmul.mubr.f32.gmra.mxu0 %v502
        %v878 = vpop.f32.mrf.mxu0
        %v879 = vadd.f32 %v675, %v878
        %v880 = vpop.f32.mrf.mxu0
        %881 = vmatprep.mubr.f32.mxu0 %v511
        %882 = vmatmul.mubr.f32.gmra.mxu0 %v510
        %v883 = vpop.f32.mrf.mxu0
        %v884 = vadd.f32 %v675, %v883
        %v885 = vpop.f32.mrf.mxu0
        %886 = vmatprep.mubr.f32.mxu0 %v519
        %887 = vmatmul.mubr.f32.gmra.mxu0 %v518
        %v888 = vpop.f32.mrf.mxu0
        %v889 = vadd.f32 %v675, %v888
        %v890 = vpop.f32.mrf.mxu0
        %891 = vmatprep.mubr.f32.mxu0 %v527
        %892 = vmatmul.mubr.f32.gmra.mxu0 %v526
        %v893 = vpop.f32.mrf.mxu0
        %v894 = vadd.f32 %v675, %v893
        %v895 = vpop.f32.mrf.mxu0
        %896 = vmatprep.mubr.f32.mxu0 %v535
        %897 = vmatmul.mubr.f32.gmra.mxu0 %v534
        %v898 = vpop.f32.mrf.mxu0
        %v899 = vadd.f32 %v675, %v898
        %v900 = vpop.f32.mrf.mxu0
        %901 = vdwg.mxu0
        %902 = vmatprep.subr.mxu0 0.0
        %903 = vmatpush1.msra.mxu0 %v589
        %904 = vmatprep.subr.mxu0 0.0
        %905 = vmatpush1.msra.mxu0 %v588
        %906 = vmatprep.subr.mxu0 0.0
        %907 = vmatpush1.msra.mxu0 %v587
        %908 = vmatprep.subr.mxu0 0.0
        %909 = vmatpush1.msra.mxu0 %v586
        %910 = vmatprep.subr.mxu0 0.0
        %911 = vmatpush1.msra.mxu0 %v585
        %912 = vmatprep.subr.mxu0 0.0
        %913 = vmatpush1.msra.mxu0 %v584
        %914 = vmatprep.subr.mxu0 0.0
        %915 = vmatpush1.msra.mxu0 %v583
        %916 = vmatprep.subr.mxu0 0.0
        %917 = vmatpush1.msra.mxu0 %v582
        %918 = vmatprep.subr.mxu0 0.0
        %919 = vmatpush1.msra.mxu0 %v581
        %920 = vmatprep.subr.mxu0 0.0
        %921 = vmatpush1.msra.mxu0 %v580
        %922 = vmatprep.subr.mxu0 0.0
        %923 = vmatpush1.msra.mxu0 %v579
        %924 = vmatprep.subr.mxu0 0.0
        %925 = vmatpush1.msra.mxu0 %v578
        %926 = vmatprep.subr.mxu0 0.0
        %927 = vmatpush1.msra.mxu0 %v577
        %928 = vmatprep.subr.mxu0 0.0
        %929 = vmatpush1.msra.mxu0 %v576
        %930 = vmatprep.subr.mxu0 0.0
        %931 = vmatpush1.msra.mxu0 %v575
        %932 = vmatprep.subr.mxu0 0.0
        %933 = vmatpush1.msra.mxu0 %v574
        %934 = vmatprep.subr.mxu0 0.0
        %935 = vmatpush2.msra.mxu0 %v605
        %936 = vmatprep.subr.mxu0 0.0
        %937 = vmatpush2.msra.mxu0 %v604
        %938 = vmatprep.subr.mxu0 0.0
        %939 = vmatpush2.msra.mxu0 %v603
        %940 = vmatprep.subr.mxu0 0.0
        %941 = vmatpush2.msra.mxu0 %v602
        %942 = vmatprep.subr.mxu0 0.0
        %943 = vmatpush2.msra.mxu0 %v601
        %944 = vmatprep.subr.mxu0 0.0
        %945 = vmatpush2.msra.mxu0 %v600
        %946 = vmatprep.subr.mxu0 0.0
        %947 = vmatpush2.msra.mxu0 %v599
        %948 = vmatprep.subr.mxu0 0.0
        %949 = vmatpush2.msra.mxu0 %v598
        %950 = vmatprep.subr.mxu0 0.0
        %951 = vmatpush2.msra.mxu0 %v597
        %952 = vmatprep.subr.mxu0 0.0
        %953 = vmatpush2.msra.mxu0 %v596
        %954 = vmatprep.subr.mxu0 0.0
        %955 = vmatpush2.msra.mxu0 %v595
        %956 = vmatprep.subr.mxu0 0.0
        %957 = vmatpush2.msra.mxu0 %v594
        %958 = vmatprep.subr.mxu0 0.0
        %959 = vmatpush2.msra.mxu0 %v593
        %960 = vmatprep.subr.mxu0 0.0
        %961 = vmatpush2.msra.mxu0 %v592
        %962 = vmatprep.subr.mxu0 0.0
        %963 = vmatpush2.msra.mxu0 %v591
        %964 = vmatprep.subr.mxu0 0.0
        %965 = vmatpush2.msra.mxu0 %v590
        %966 = vmatprep.mubr.f32.mxu0 %v289
        %967 = vmatmul.mubr.f32.gmra.mxu0 %v288
        %v968 = vpop.f32.mrf.mxu0
        %v969 = vadd.f32 %v744, %v968
        %v970 = vpop.f32.mrf.mxu0
        %971 = vmatprep.mubr.f32.mxu0 %v297
        %972 = vmatmul.mubr.f32.gmra.mxu0 %v296
        %v973 = vpop.f32.mrf.mxu0
        %v974 = vadd.f32 %v749, %v973
        %v975 = vpop.f32.mrf.mxu0
        %976 = vmatprep.mubr.f32.mxu0 %v305
        %977 = vmatmul.mubr.f32.gmra.mxu0 %v304
        %v978 = vpop.f32.mrf.mxu0
        %v979 = vadd.f32 %v754, %v978
        %v980 = vpop.f32.mrf.mxu0
        %981 = vmatprep.mubr.f32.mxu0 %v313
        %982 = vmatmul.mubr.f32.gmra.mxu0 %v312
        %v983 = vpop.f32.mrf.mxu0
        %v984 = vadd.f32 %v759, %v983
        %v985 = vpop.f32.mrf.mxu0
        %986 = vmatprep.mubr.f32.mxu0 %v321
        %987 = vmatmul.mubr.f32.gmra.mxu0 %v320
        %v988 = vpop.f32.mrf.mxu0
        %v989 = vadd.f32 %v764, %v988
        %v990 = vpop.f32.mrf.mxu0
        %991 = vmatprep.mubr.f32.mxu0 %v329
        %992 = vmatmul.mubr.f32.gmra.mxu0 %v328
        %v993 = vpop.f32.mrf.mxu0
        %v994 = vadd.f32 %v769, %v993
        %v995 = vpop.f32.mrf.mxu0
        %996 = vmatprep.mubr.f32.mxu0 %v337
        %997 = vmatmul.mubr.f32.gmra.mxu0 %v336
        %v998 = vpop.f32.mrf.mxu0
        %v999 = vadd.f32 %v774, %v998
        %v1000 = vpop.f32.mrf.mxu0
        %1001 = vmatprep.mubr.f32.mxu0 %v345
        %1002 = vmatmul.mubr.f32.gmra.mxu0 %v344
        %v1003 = vpop.f32.mrf.mxu0
        %v1004 = vadd.f32 %v779, %v1003
        %v1005 = vpop.f32.mrf.mxu0
        %1006 = vmatprep.mubr.f32.mxu0 %v353
        %1007 = vmatmul.mubr.f32.gmra.mxu0 %v352
        %v1008 = vpop.f32.mrf.mxu0
        %v1009 = vadd.f32 %v784, %v1008
        %v1010 = vpop.f32.mrf.mxu0
        %1011 = vmatprep.mubr.f32.mxu0 %v361
        %1012 = vmatmul.mubr.f32.gmra.mxu0 %v360
        %v1013 = vpop.f32.mrf.mxu0
        %v1014 = vadd.f32 %v789, %v1013
        %v1015 = vpop.f32.mrf.mxu0
        %1016 = vmatprep.mubr.f32.mxu0 %v369
        %1017 = vmatmul.mubr.f32.gmra.mxu0 %v368
        %v1018 = vpop.f32.mrf.mxu0
        %v1019 = vadd.f32 %v794, %v1018
        %v1020 = vpop.f32.mrf.mxu0
        %1021 = vmatprep.mubr.f32.mxu0 %v377
        %1022 = vmatmul.mubr.f32.gmra.mxu0 %v376
        %v1023 = vpop.f32.mrf.mxu0
        %v1024 = vadd.f32 %v799, %v1023
        %v1025 = vpop.f32.mrf.mxu0
        %1026 = vmatprep.mubr.f32.mxu0 %v385
        %1027 = vmatmul.mubr.f32.gmra.mxu0 %v384
        %v1028 = vpop.f32.mrf.mxu0
        %v1029 = vadd.f32 %v804, %v1028
        %v1030 = vpop.f32.mrf.mxu0
        %1031 = vmatprep.mubr.f32.mxu0 %v393
        %1032 = vmatmul.mubr.f32.gmra.mxu0 %v392
        %v1033 = vpop.f32.mrf.mxu0
        %v1034 = vadd.f32 %v809, %v1033
        %v1035 = vpop.f32.mrf.mxu0
        %1036 = vmatprep.mubr.f32.mxu0 %v401
        %1037 = vmatmul.mubr.f32.gmra.mxu0 %v400
        %v1038 = vpop.f32.mrf.mxu0
        %v1039 = vadd.f32 %v814, %v1038
        %v1040 = vpop.f32.mrf.mxu0
        %1041 = vmatprep.mubr.f32.mxu0 %v409
        %1042 = vmatmul.mubr.f32.gmra.mxu0 %v408
        %v1043 = vpop.f32.mrf.mxu0
        %v1044 = vadd.f32 %v819, %v1043
        %v1045 = vpop.f32.mrf.mxu0
        %1046 = vmatprep.mubr.f32.mxu0 %v417
        %1047 = vmatmul.mubr.f32.gmra.mxu0 %v416
        %v1048 = vpop.f32.mrf.mxu0
        %v1049 = vadd.f32 %v824, %v1048
        %v1050 = vpop.f32.mrf.mxu0
        %1051 = vmatprep.mubr.f32.mxu0 %v425
        %1052 = vmatmul.mubr.f32.gmra.mxu0 %v424
        %v1053 = vpop.f32.mrf.mxu0
        %v1054 = vadd.f32 %v829, %v1053
        %v1055 = vpop.f32.mrf.mxu0
        %1056 = vmatprep.mubr.f32.mxu0 %v433
        %1057 = vmatmul.mubr.f32.gmra.mxu0 %v432
        %v1058 = vpop.f32.mrf.mxu0
        %v1059 = vadd.f32 %v834, %v1058
        %v1060 = vpop.f32.mrf.mxu0
        %1061 = vmatprep.mubr.f32.mxu0 %v441
        %1062 = vmatmul.mubr.f32.gmra.mxu0 %v440
        %v1063 = vpop.f32.mrf.mxu0
        %v1064 = vadd.f32 %v839, %v1063
        %v1065 = vpop.f32.mrf.mxu0
        %1066 = vmatprep.mubr.f32.mxu0 %v449
        %1067 = vmatmul.mubr.f32.gmra.mxu0 %v448
        %v1068 = vpop.f32.mrf.mxu0
        %v1069 = vadd.f32 %v844, %v1068
        %v1070 = vpop.f32.mrf.mxu0
        %1071 = vmatprep.mubr.f32.mxu0 %v457
        %1072 = vmatmul.mubr.f32.gmra.mxu0 %v456
        %v1073 = vpop.f32.mrf.mxu0
        %v1074 = vadd.f32 %v849, %v1073
        %v1075 = vpop.f32.mrf.mxu0
        %1076 = vmatprep.mubr.f32.mxu0 %v465
        %1077 = vmatmul.mubr.f32.gmra.mxu0 %v464
        %v1078 = vpop.f32.mrf.mxu0
        %v1079 = vadd.f32 %v854, %v1078
        %v1080 = vpop.f32.mrf.mxu0
        %1081 = vmatprep.mubr.f32.mxu0 %v473
        %1082 = vmatmul.mubr.f32.gmra.mxu0 %v472
        %v1083 = vpop.f32.mrf.mxu0
        %v1084 = vadd.f32 %v859, %v1083
        %v1085 = vpop.f32.mrf.mxu0
        %1086 = vmatprep.mubr.f32.mxu0 %v481
        %1087 = vmatmul.mubr.f32.gmra.mxu0 %v480
        %v1088 = vpop.f32.mrf.mxu0
        %v1089 = vadd.f32 %v864, %v1088
        %v1090 = vpop.f32.mrf.mxu0
        %1091 = vmatprep.mubr.f32.mxu0 %v489
        %1092 = vmatmul.mubr.f32.gmra.mxu0 %v488
        %v1093 = vpop.f32.mrf.mxu0
        %v1094 = vadd.f32 %v869, %v1093
        %v1095 = vpop.f32.mrf.mxu0
        %1096 = vmatprep.mubr.f32.mxu0 %v497
        %1097 = vmatmul.mubr.f32.gmra.mxu0 %v496
        %v1098 = vpop.f32.mrf.mxu0
        %v1099 = vadd.f32 %v874, %v1098
        %v1100 = vpop.f32.mrf.mxu0
        %1101 = vmatprep.mubr.f32.mxu0 %v505
        %1102 = vmatmul.mubr.f32.gmra.mxu0 %v504
        %v1103 = vpop.f32.mrf.mxu0
        %v1104 = vadd.f32 %v879, %v1103
        %v1105 = vpop.f32.mrf.mxu0
        %1106 = vmatprep.mubr.f32.mxu0 %v513
        %1107 = vmatmul.mubr.f32.gmra.mxu0 %v512
        %v1108 = vpop.f32.mrf.mxu0
        %v1109 = vadd.f32 %v884, %v1108
        %v1110 = vpop.f32.mrf.mxu0
        %1111 = vmatprep.mubr.f32.mxu0 %v521
        %1112 = vmatmul.mubr.f32.gmra.mxu0 %v520
        %v1113 = vpop.f32.mrf.mxu0
        %v1114 = vadd.f32 %v889, %v1113
        %v1115 = vpop.f32.mrf.mxu0
        %1116 = vmatprep.mubr.f32.mxu0 %v529
        %1117 = vmatmul.mubr.f32.gmra.mxu0 %v528
        %v1118 = vpop.f32.mrf.mxu0
        %v1119 = vadd.f32 %v894, %v1118
        %v1120 = vpop.f32.mrf.mxu0
        %1121 = vmatprep.mubr.f32.mxu0 %v537
        %1122 = vmatmul.mubr.f32.gmra.mxu0 %v536
        %v1123 = vpop.f32.mrf.mxu0
        %v1124 = vadd.f32 %v899, %v1123
        %v1125 = vpop.f32.mrf.mxu0
        %1126 = vdwg.mxu0
        %1127 = vmatprep.subr.mxu0 0.0
        %1128 = vmatpush1.msra.mxu0 %v621
        %1129 = vmatprep.subr.mxu0 0.0
        %1130 = vmatpush1.msra.mxu0 %v620
        %1131 = vmatprep.subr.mxu0 0.0
        %1132 = vmatpush1.msra.mxu0 %v619
        %1133 = vmatprep.subr.mxu0 0.0
        %1134 = vmatpush1.msra.mxu0 %v618
        %1135 = vmatprep.subr.mxu0 0.0
        %1136 = vmatpush1.msra.mxu0 %v617
        %1137 = vmatprep.subr.mxu0 0.0
        %1138 = vmatpush1.msra.mxu0 %v616
        %1139 = vmatprep.subr.mxu0 0.0
        %1140 = vmatpush1.msra.mxu0 %v615
        %1141 = vmatprep.subr.mxu0 0.0
        %1142 = vmatpush1.msra.mxu0 %v614
        %1143 = vmatprep.subr.mxu0 0.0
        %1144 = vmatpush1.msra.mxu0 %v613
        %1145 = vmatprep.subr.mxu0 0.0
        %1146 = vmatpush1.msra.mxu0 %v612
        %1147 = vmatprep.subr.mxu0 0.0
        %1148 = vmatpush1.msra.mxu0 %v611
        %1149 = vmatprep.subr.mxu0 0.0
        %1150 = vmatpush1.msra.mxu0 %v610
        %1151 = vmatprep.subr.mxu0 0.0
        %1152 = vmatpush1.msra.mxu0 %v609
        %1153 = vmatprep.subr.mxu0 0.0
        %1154 = vmatpush1.msra.mxu0 %v608
        %1155 = vmatprep.subr.mxu0 0.0
        %1156 = vmatpush1.msra.mxu0 %v607
        %1157 = vmatprep.subr.mxu0 0.0
        %1158 = vmatpush1.msra.mxu0 %v606
        %1159 = vmatprep.subr.mxu0 0.0
        %1160 = vmatpush2.msra.mxu0 %v637
        %1161 = vmatprep.subr.mxu0 0.0
        %1162 = vmatpush2.msra.mxu0 %v636
        %1163 = vmatprep.subr.mxu0 0.0
        %1164 = vmatpush2.msra.mxu0 %v635
        %1165 = vmatprep.subr.mxu0 0.0
        %1166 = vmatpush2.msra.mxu0 %v634
        %1167 = vmatprep.subr.mxu0 0.0
        %1168 = vmatpush2.msra.mxu0 %v633
        %1169 = vmatprep.subr.mxu0 0.0
        %1170 = vmatpush2.msra.mxu0 %v632
        %1171 = vmatprep.subr.mxu0 0.0
        %1172 = vmatpush2.msra.mxu0 %v631
        %1173 = vmatprep.subr.mxu0 0.0
        %1174 = vmatpush2.msra.mxu0 %v630
        %1175 = vmatprep.subr.mxu0 0.0
        %1176 = vmatpush2.msra.mxu0 %v629
        %1177 = vmatprep.subr.mxu0 0.0
        %1178 = vmatpush2.msra.mxu0 %v628
        %1179 = vmatprep.subr.mxu0 0.0
        %1180 = vmatpush2.msra.mxu0 %v627
        %1181 = vmatprep.subr.mxu0 0.0
        %1182 = vmatpush2.msra.mxu0 %v626
        %1183 = vmatprep.subr.mxu0 0.0
        %1184 = vmatpush2.msra.mxu0 %v625
        %1185 = vmatprep.subr.mxu0 0.0
        %1186 = vmatpush2.msra.mxu0 %v624
        %1187 = vmatprep.subr.mxu0 0.0
        %1188 = vmatpush2.msra.mxu0 %v623
        %1189 = vmatprep.subr.mxu0 0.0
        %1190 = vmatpush2.msra.mxu0 %v622
        %1191 = vmatprep.mubr.f32.mxu0 %v291
        %1192 = vmatmul.mubr.f32.gmra.mxu0 %v290
        %v1193 = vpop.f32.mrf.mxu0
        %v1194 = vadd.f32 %v969, %v1193
        %v1195 = vpop.f32.mrf.mxu0
        %1196 = vmatprep.mubr.f32.mxu0 %v299
        %1197 = vmatmul.mubr.f32.gmra.mxu0 %v298
        %v1198 = vpop.f32.mrf.mxu0
        %v1199 = vadd.f32 %v974, %v1198
        %v1200 = vpop.f32.mrf.mxu0
        %1201 = vmatprep.mubr.f32.mxu0 %v307
        %1202 = vmatmul.mubr.f32.gmra.mxu0 %v306
        %v1203 = vpop.f32.mrf.mxu0
        %v1204 = vadd.f32 %v979, %v1203
        %v1205 = vpop.f32.mrf.mxu0
        %1206 = vmatprep.mubr.f32.mxu0 %v315
        %1207 = vmatmul.mubr.f32.gmra.mxu0 %v314
        %v1208 = vpop.f32.mrf.mxu0
        %v1209 = vadd.f32 %v984, %v1208
        %v1210 = vpop.f32.mrf.mxu0
        %1211 = vmatprep.mubr.f32.mxu0 %v323
        %1212 = vmatmul.mubr.f32.gmra.mxu0 %v322
        %v1213 = vpop.f32.mrf.mxu0
        %v1214 = vadd.f32 %v989, %v1213
        %v1215 = vpop.f32.mrf.mxu0
        %1216 = vmatprep.mubr.f32.mxu0 %v331
        %1217 = vmatmul.mubr.f32.gmra.mxu0 %v330
        %v1218 = vpop.f32.mrf.mxu0
        %v1219 = vadd.f32 %v994, %v1218
        %v1220 = vpop.f32.mrf.mxu0
        %1221 = vmatprep.mubr.f32.mxu0 %v339
        %1222 = vmatmul.mubr.f32.gmra.mxu0 %v338
        %v1223 = vpop.f32.mrf.mxu0
        %v1224 = vadd.f32 %v999, %v1223
        %v1225 = vpop.f32.mrf.mxu0
        %1226 = vmatprep.mubr.f32.mxu0 %v347
        %1227 = vmatmul.mubr.f32.gmra.mxu0 %v346
        %v1228 = vpop.f32.mrf.mxu0
        %v1229 = vadd.f32 %v1004, %v1228
        %v1230 = vpop.f32.mrf.mxu0
        %1231 = vmatprep.mubr.f32.mxu0 %v355
        %1232 = vmatmul.mubr.f32.gmra.mxu0 %v354
        %v1233 = vpop.f32.mrf.mxu0
        %v1234 = vadd.f32 %v1009, %v1233
        %v1235 = vpop.f32.mrf.mxu0
        %1236 = vmatprep.mubr.f32.mxu0 %v363
        %1237 = vmatmul.mubr.f32.gmra.mxu0 %v362
        %v1238 = vpop.f32.mrf.mxu0
        %v1239 = vadd.f32 %v1014, %v1238
        %v1240 = vpop.f32.mrf.mxu0
        %1241 = vmatprep.mubr.f32.mxu0 %v371
        %1242 = vmatmul.mubr.f32.gmra.mxu0 %v370
        %v1243 = vpop.f32.mrf.mxu0
        %v1244 = vadd.f32 %v1019, %v1243
        %v1245 = vpop.f32.mrf.mxu0
        %1246 = vmatprep.mubr.f32.mxu0 %v379
        %1247 = vmatmul.mubr.f32.gmra.mxu0 %v378
        %v1248 = vpop.f32.mrf.mxu0
        %v1249 = vadd.f32 %v1024, %v1248
        %v1250 = vpop.f32.mrf.mxu0
        %1251 = vmatprep.mubr.f32.mxu0 %v387
        %1252 = vmatmul.mubr.f32.gmra.mxu0 %v386
        %v1253 = vpop.f32.mrf.mxu0
        %v1254 = vadd.f32 %v1029, %v1253
        %v1255 = vpop.f32.mrf.mxu0
        %1256 = vmatprep.mubr.f32.mxu0 %v395
        %1257 = vmatmul.mubr.f32.gmra.mxu0 %v394
        %v1258 = vpop.f32.mrf.mxu0
        %v1259 = vadd.f32 %v1034, %v1258
        %v1260 = vpop.f32.mrf.mxu0
        %1261 = vmatprep.mubr.f32.mxu0 %v403
        %1262 = vmatmul.mubr.f32.gmra.mxu0 %v402
        %v1263 = vpop.f32.mrf.mxu0
        %v1264 = vadd.f32 %v1039, %v1263
        %v1265 = vpop.f32.mrf.mxu0
        %1266 = vmatprep.mubr.f32.mxu0 %v411
        %1267 = vmatmul.mubr.f32.gmra.mxu0 %v410
        %v1268 = vpop.f32.mrf.mxu0
        %v1269 = vadd.f32 %v1044, %v1268
        %v1270 = vpop.f32.mrf.mxu0
        %1271 = vmatprep.mubr.f32.mxu0 %v419
        %1272 = vmatmul.mubr.f32.gmra.mxu0 %v418
        %v1273 = vpop.f32.mrf.mxu0
        %v1274 = vadd.f32 %v1049, %v1273
        %v1275 = vpop.f32.mrf.mxu0
        %1276 = vmatprep.mubr.f32.mxu0 %v427
        %1277 = vmatmul.mubr.f32.gmra.mxu0 %v426
        %v1278 = vpop.f32.mrf.mxu0
        %v1279 = vadd.f32 %v1054, %v1278
        %v1280 = vpop.f32.mrf.mxu0
        %1281 = vmatprep.mubr.f32.mxu0 %v435
        %1282 = vmatmul.mubr.f32.gmra.mxu0 %v434
        %v1283 = vpop.f32.mrf.mxu0
        %v1284 = vadd.f32 %v1059, %v1283
        %v1285 = vpop.f32.mrf.mxu0
        %1286 = vmatprep.mubr.f32.mxu0 %v443
        %1287 = vmatmul.mubr.f32.gmra.mxu0 %v442
        %v1288 = vpop.f32.mrf.mxu0
        %v1289 = vadd.f32 %v1064, %v1288
        %v1290 = vpop.f32.mrf.mxu0
        %1291 = vmatprep.mubr.f32.mxu0 %v451
        %1292 = vmatmul.mubr.f32.gmra.mxu0 %v450
        %v1293 = vpop.f32.mrf.mxu0
        %v1294 = vadd.f32 %v1069, %v1293
        %v1295 = vpop.f32.mrf.mxu0
        %1296 = vmatprep.mubr.f32.mxu0 %v459
        %1297 = vmatmul.mubr.f32.gmra.mxu0 %v458
        %v1298 = vpop.f32.mrf.mxu0
        %v1299 = vadd.f32 %v1074, %v1298
        %v1300 = vpop.f32.mrf.mxu0
        %1301 = vmatprep.mubr.f32.mxu0 %v467
        %1302 = vmatmul.mubr.f32.gmra.mxu0 %v466
        %v1303 = vpop.f32.mrf.mxu0
        %v1304 = vadd.f32 %v1079, %v1303
        %v1305 = vpop.f32.mrf.mxu0
        %1306 = vmatprep.mubr.f32.mxu0 %v475
        %1307 = vmatmul.mubr.f32.gmra.mxu0 %v474
        %v1308 = vpop.f32.mrf.mxu0
        %v1309 = vadd.f32 %v1084, %v1308
        %v1310 = vpop.f32.mrf.mxu0
        %1311 = vmatprep.mubr.f32.mxu0 %v483
        %1312 = vmatmul.mubr.f32.gmra.mxu0 %v482
        %v1313 = vpop.f32.mrf.mxu0
        %v1314 = vadd.f32 %v1089, %v1313
        %v1315 = vpop.f32.mrf.mxu0
        %1316 = vmatprep.mubr.f32.mxu0 %v491
        %1317 = vmatmul.mubr.f32.gmra.mxu0 %v490
        %v1318 = vpop.f32.mrf.mxu0
        %v1319 = vadd.f32 %v1094, %v1318
        %v1320 = vpop.f32.mrf.mxu0
        %1321 = vmatprep.mubr.f32.mxu0 %v499
        %1322 = vmatmul.mubr.f32.gmra.mxu0 %v498
        %v1323 = vpop.f32.mrf.mxu0
        %v1324 = vadd.f32 %v1099, %v1323
        %v1325 = vpop.f32.mrf.mxu0
        %1326 = vmatprep.mubr.f32.mxu0 %v507
        %1327 = vmatmul.mubr.f32.gmra.mxu0 %v506
        %v1328 = vpop.f32.mrf.mxu0
        %v1329 = vadd.f32 %v1104, %v1328
        %v1330 = vpop.f32.mrf.mxu0
        %1331 = vmatprep.mubr.f32.mxu0 %v515
        %1332 = vmatmul.mubr.f32.gmra.mxu0 %v514
        %v1333 = vpop.f32.mrf.mxu0
        %v1334 = vadd.f32 %v1109, %v1333
        %v1335 = vpop.f32.mrf.mxu0
        %1336 = vmatprep.mubr.f32.mxu0 %v523
        %1337 = vmatmul.mubr.f32.gmra.mxu0 %v522
        %v1338 = vpop.f32.mrf.mxu0
        %v1339 = vadd.f32 %v1114, %v1338
        %v1340 = vpop.f32.mrf.mxu0
        %1341 = vmatprep.mubr.f32.mxu0 %v531
        %1342 = vmatmul.mubr.f32.gmra.mxu0 %v530
        %v1343 = vpop.f32.mrf.mxu0
        %v1344 = vadd.f32 %v1119, %v1343
        %v1345 = vpop.f32.mrf.mxu0
        %1346 = vmatprep.mubr.f32.mxu0 %v539
        %1347 = vmatmul.mubr.f32.gmra.mxu0 %v538
        %v1348 = vpop.f32.mrf.mxu0
        %v1349 = vadd.f32 %v1124, %v1348
        %v1350 = vpop.f32.mrf.mxu0
        %1351 = vdwg.mxu0
        %1352 = vmatprep.subr.mxu0 0.0
        %1353 = vmatpush1.msra.mxu0 %v653
        %1354 = vmatprep.subr.mxu0 0.0
        %1355 = vmatpush1.msra.mxu0 %v652
        %1356 = vmatprep.subr.mxu0 0.0
        %1357 = vmatpush1.msra.mxu0 %v651
        %1358 = vmatprep.subr.mxu0 0.0
        %1359 = vmatpush1.msra.mxu0 %v650
        %1360 = vmatprep.subr.mxu0 0.0
        %1361 = vmatpush1.msra.mxu0 %v649
        %1362 = vmatprep.subr.mxu0 0.0
        %1363 = vmatpush1.msra.mxu0 %v648
        %1364 = vmatprep.subr.mxu0 0.0
        %1365 = vmatpush1.msra.mxu0 %v647
        %1366 = vmatprep.subr.mxu0 0.0
        %1367 = vmatpush1.msra.mxu0 %v646
        %1368 = vmatprep.subr.mxu0 0.0
        %1369 = vmatpush1.msra.mxu0 %v645
        %1370 = vmatprep.subr.mxu0 0.0
        %1371 = vmatpush1.msra.mxu0 %v644
        %1372 = vmatprep.subr.mxu0 0.0
        %1373 = vmatpush1.msra.mxu0 %v643
        %1374 = vmatprep.subr.mxu0 0.0
        %1375 = vmatpush1.msra.mxu0 %v642
        %1376 = vmatprep.subr.mxu0 0.0
        %1377 = vmatpush1.msra.mxu0 %v641
        %1378 = vmatprep.subr.mxu0 0.0
        %1379 = vmatpush1.msra.mxu0 %v640
        %1380 = vmatprep.subr.mxu0 0.0
        %1381 = vmatpush1.msra.mxu0 %v639
        %1382 = vmatprep.subr.mxu0 0.0
        %1383 = vmatpush1.msra.mxu0 %v638
        %1384 = vmatprep.subr.mxu0 0.0
        %1385 = vmatpush2.msra.mxu0 %v669
        %1386 = vmatprep.subr.mxu0 0.0
        %1387 = vmatpush2.msra.mxu0 %v668
        %1388 = vmatprep.subr.mxu0 0.0
        %1389 = vmatpush2.msra.mxu0 %v667
        %1390 = vmatprep.subr.mxu0 0.0
        %1391 = vmatpush2.msra.mxu0 %v666
        %1392 = vmatprep.subr.mxu0 0.0
        %1393 = vmatpush2.msra.mxu0 %v665
        %1394 = vmatprep.subr.mxu0 0.0
        %1395 = vmatpush2.msra.mxu0 %v664
        %1396 = vmatprep.subr.mxu0 0.0
        %1397 = vmatpush2.msra.mxu0 %v663
        %1398 = vmatprep.subr.mxu0 0.0
        %1399 = vmatpush2.msra.mxu0 %v662
        %1400 = vmatprep.subr.mxu0 0.0
        %1401 = vmatpush2.msra.mxu0 %v661
        %1402 = vmatprep.subr.mxu0 0.0
        %1403 = vmatpush2.msra.mxu0 %v660
        %1404 = vmatprep.subr.mxu0 0.0
        %1405 = vmatpush2.msra.mxu0 %v659
        %1406 = vmatprep.subr.mxu0 0.0
        %1407 = vmatpush2.msra.mxu0 %v658
        %1408 = vmatprep.subr.mxu0 0.0
        %1409 = vmatpush2.msra.mxu0 %v657
        %1410 = vmatprep.subr.mxu0 0.0
        %1411 = vmatpush2.msra.mxu0 %v656
        %1412 = vmatprep.subr.mxu0 0.0
        %1413 = vmatpush2.msra.mxu0 %v655
        %1414 = vmatprep.subr.mxu0 0.0
        %1415 = vmatpush2.msra.mxu0 %v654
        %1416 = vmatprep.mubr.f32.mxu0 %v293
        %1417 = vmatmul.mubr.f32.gmra.mxu0 %v292
        %v1418 = vpop.f32.mrf.mxu0
        %v1419 = vadd.f32 %v1194, %v1418
        %v1420 = vpop.f32.mrf.mxu0
        %1421 = vmatprep.mubr.f32.mxu0 %v301
        %1422 = vmatmul.mubr.f32.gmra.mxu0 %v300
        %v1423 = vpop.f32.mrf.mxu0
        %v1424 = vadd.f32 %v1199, %v1423
        %v1425 = vpop.f32.mrf.mxu0
        %1426 = vmatprep.mubr.f32.mxu0 %v309
        %1427 = vmatmul.mubr.f32.gmra.mxu0 %v308
        %v1428 = vpop.f32.mrf.mxu0
        %v1429 = vadd.f32 %v1204, %v1428
        %v1430 = vpop.f32.mrf.mxu0
        %1431 = vmatprep.mubr.f32.mxu0 %v317
        %1432 = vmatmul.mubr.f32.gmra.mxu0 %v316
        %v1433 = vpop.f32.mrf.mxu0
        %v1434 = vadd.f32 %v1209, %v1433
        %v1435 = vpop.f32.mrf.mxu0
        %1436 = vmatprep.mubr.f32.mxu0 %v325
        %1437 = vmatmul.mubr.f32.gmra.mxu0 %v324
        %v1438 = vpop.f32.mrf.mxu0
        %v1439 = vadd.f32 %v1214, %v1438
        %v1440 = vpop.f32.mrf.mxu0
        %1441 = vmatprep.mubr.f32.mxu0 %v333
        %1442 = vmatmul.mubr.f32.gmra.mxu0 %v332
        %v1443 = vpop.f32.mrf.mxu0
        %v1444 = vadd.f32 %v1219, %v1443
        %v1445 = vpop.f32.mrf.mxu0
        %1446 = vmatprep.mubr.f32.mxu0 %v341
        %1447 = vmatmul.mubr.f32.gmra.mxu0 %v340
        %v1448 = vpop.f32.mrf.mxu0
        %v1449 = vadd.f32 %v1224, %v1448
        %v1450 = vpop.f32.mrf.mxu0
        %1451 = vmatprep.mubr.f32.mxu0 %v349
        %1452 = vmatmul.mubr.f32.gmra.mxu0 %v348
        %v1453 = vpop.f32.mrf.mxu0
        %v1454 = vadd.f32 %v1229, %v1453
        %v1455 = vpop.f32.mrf.mxu0
        %1456 = vmatprep.mubr.f32.mxu0 %v357
        %1457 = vmatmul.mubr.f32.gmra.mxu0 %v356
        %v1458 = vpop.f32.mrf.mxu0
        %v1459 = vadd.f32 %v1234, %v1458
        %v1460 = vpop.f32.mrf.mxu0
        %1461 = vmatprep.mubr.f32.mxu0 %v365
        %1462 = vmatmul.mubr.f32.gmra.mxu0 %v364
        %v1463 = vpop.f32.mrf.mxu0
        %v1464 = vadd.f32 %v1239, %v1463
        %v1465 = vpop.f32.mrf.mxu0
        %1466 = vmatprep.mubr.f32.mxu0 %v373
        %1467 = vmatmul.mubr.f32.gmra.mxu0 %v372
        %v1468 = vpop.f32.mrf.mxu0
        %v1469 = vadd.f32 %v1244, %v1468
        %v1470 = vpop.f32.mrf.mxu0
        %1471 = vmatprep.mubr.f32.mxu0 %v381
        %1472 = vmatmul.mubr.f32.gmra.mxu0 %v380
        %v1473 = vpop.f32.mrf.mxu0
        %v1474 = vadd.f32 %v1249, %v1473
        %v1475 = vpop.f32.mrf.mxu0
        %1476 = vmatprep.mubr.f32.mxu0 %v389
        %1477 = vmatmul.mubr.f32.gmra.mxu0 %v388
        %v1478 = vpop.f32.mrf.mxu0
        %v1479 = vadd.f32 %v1254, %v1478
        %v1480 = vpop.f32.mrf.mxu0
        %1481 = vmatprep.mubr.f32.mxu0 %v397
        %1482 = vmatmul.mubr.f32.gmra.mxu0 %v396
        %v1483 = vpop.f32.mrf.mxu0
        %v1484 = vadd.f32 %v1259, %v1483
        %v1485 = vpop.f32.mrf.mxu0
        %1486 = vmatprep.mubr.f32.mxu0 %v405
        %1487 = vmatmul.mubr.f32.gmra.mxu0 %v404
        %v1488 = vpop.f32.mrf.mxu0
        %v1489 = vadd.f32 %v1264, %v1488
        %v1490 = vpop.f32.mrf.mxu0
        %1491 = vmatprep.mubr.f32.mxu0 %v413
        %1492 = vmatmul.mubr.f32.gmra.mxu0 %v412
        %v1493 = vpop.f32.mrf.mxu0
        %v1494 = vadd.f32 %v1269, %v1493
        %v1495 = vpop.f32.mrf.mxu0
        %1496 = vmatprep.mubr.f32.mxu0 %v421
        %1497 = vmatmul.mubr.f32.gmra.mxu0 %v420
        %v1498 = vpop.f32.mrf.mxu0
        %v1499 = vadd.f32 %v1274, %v1498
        %v1500 = vpop.f32.mrf.mxu0
        %1501 = vmatprep.mubr.f32.mxu0 %v429
        %1502 = vmatmul.mubr.f32.gmra.mxu0 %v428
        %v1503 = vpop.f32.mrf.mxu0
        %v1504 = vadd.f32 %v1279, %v1503
        %v1505 = vpop.f32.mrf.mxu0
        %1506 = vmatprep.mubr.f32.mxu0 %v437
        %1507 = vmatmul.mubr.f32.gmra.mxu0 %v436
        %v1508 = vpop.f32.mrf.mxu0
        %v1509 = vadd.f32 %v1284, %v1508
        %v1510 = vpop.f32.mrf.mxu0
        %1511 = vmatprep.mubr.f32.mxu0 %v445
        %1512 = vmatmul.mubr.f32.gmra.mxu0 %v444
        %v1513 = vpop.f32.mrf.mxu0
        %v1514 = vadd.f32 %v1289, %v1513
        %v1515 = vpop.f32.mrf.mxu0
        %1516 = vmatprep.mubr.f32.mxu0 %v453
        %1517 = vmatmul.mubr.f32.gmra.mxu0 %v452
        %v1518 = vpop.f32.mrf.mxu0
        %v1519 = vadd.f32 %v1294, %v1518
        %v1520 = vpop.f32.mrf.mxu0
        %1521 = vmatprep.mubr.f32.mxu0 %v461
        %1522 = vmatmul.mubr.f32.gmra.mxu0 %v460
        %v1523 = vpop.f32.mrf.mxu0
        %v1524 = vadd.f32 %v1299, %v1523
        %v1525 = vpop.f32.mrf.mxu0
        %1526 = vmatprep.mubr.f32.mxu0 %v469
        %1527 = vmatmul.mubr.f32.gmra.mxu0 %v468
        %v1528 = vpop.f32.mrf.mxu0
        %v1529 = vadd.f32 %v1304, %v1528
        %v1530 = vpop.f32.mrf.mxu0
        %1531 = vmatprep.mubr.f32.mxu0 %v477
        %1532 = vmatmul.mubr.f32.gmra.mxu0 %v476
        %v1533 = vpop.f32.mrf.mxu0
        %v1534 = vadd.f32 %v1309, %v1533
        %v1535 = vpop.f32.mrf.mxu0
        %1536 = vmatprep.mubr.f32.mxu0 %v485
        %1537 = vmatmul.mubr.f32.gmra.mxu0 %v484
        %v1538 = vpop.f32.mrf.mxu0
        %v1539 = vadd.f32 %v1314, %v1538
        %v1540 = vpop.f32.mrf.mxu0
        %1541 = vmatprep.mubr.f32.mxu0 %v493
        %1542 = vmatmul.mubr.f32.gmra.mxu0 %v492
        %v1543 = vpop.f32.mrf.mxu0
        %v1544 = vadd.f32 %v1319, %v1543
        %v1545 = vpop.f32.mrf.mxu0
        %1546 = vmatprep.mubr.f32.mxu0 %v501
        %1547 = vmatmul.mubr.f32.gmra.mxu0 %v500
        %v1548 = vpop.f32.mrf.mxu0
        %v1549 = vadd.f32 %v1324, %v1548
        %v1550 = vpop.f32.mrf.mxu0
        %1551 = vmatprep.mubr.f32.mxu0 %v509
        %1552 = vmatmul.mubr.f32.gmra.mxu0 %v508
        %v1553 = vpop.f32.mrf.mxu0
        %v1554 = vadd.f32 %v1329, %v1553
        %v1555 = vpop.f32.mrf.mxu0
        %1556 = vmatprep.mubr.f32.mxu0 %v517
        %1557 = vmatmul.mubr.f32.gmra.mxu0 %v516
        %v1558 = vpop.f32.mrf.mxu0
        %v1559 = vadd.f32 %v1334, %v1558
        %v1560 = vpop.f32.mrf.mxu0
        %1561 = vmatprep.mubr.f32.mxu0 %v525
        %1562 = vmatmul.mubr.f32.gmra.mxu0 %v524
        %v1563 = vpop.f32.mrf.mxu0
        %v1564 = vadd.f32 %v1339, %v1563
        %v1565 = vpop.f32.mrf.mxu0
        %1566 = vmatprep.mubr.f32.mxu0 %v533
        %1567 = vmatmul.mubr.f32.gmra.mxu0 %v532
        %v1568 = vpop.f32.mrf.mxu0
        %v1569 = vadd.f32 %v1344, %v1568
        %v1570 = vpop.f32.mrf.mxu0
        %1571 = vmatprep.mubr.f32.mxu0 %v541
        %1572 = vmatmul.mubr.f32.gmra.mxu0 %v540
        %v1573 = vpop.f32.mrf.mxu0
        %v1574 = vadd.f32 %v1349, %v1573
        %v1575 = vpop.f32.mrf.mxu0
        %1576 = vdwg.mxu0
        %v1577 = vsub.f32 0.0, %v1419
        %v1578 = vsub.f32 0.0, %v1424
        %v1579 = vsub.f32 0.0, %v1429
        %v1580 = vsub.f32 0.0, %v1434
        %v1581 = vsub.f32 0.0, %v1439
        %v1582 = vsub.f32 0.0, %v1444
        %v1583 = vsub.f32 0.0, %v1449
        %v1584 = vsub.f32 0.0, %v1454
        %v1585 = vsub.f32 0.0, %v1459
        %v1586 = vsub.f32 0.0, %v1464
        %v1587 = vsub.f32 0.0, %v1469
        %v1588 = vsub.f32 0.0, %v1474
        %v1589 = vsub.f32 0.0, %v1479
        %v1590 = vsub.f32 0.0, %v1484
        %v1591 = vsub.f32 0.0, %v1489
        %v1592 = vsub.f32 0.0, %v1494
        %v1593 = vsub.f32 0.0, %v1499
        %v1594 = vsub.f32 0.0, %v1504
        %v1595 = vsub.f32 0.0, %v1509
        %v1596 = vsub.f32 0.0, %v1514
        %v1597 = vsub.f32 0.0, %v1519
        %v1598 = vsub.f32 0.0, %v1524
        %v1599 = vsub.f32 0.0, %v1529
        %v1600 = vsub.f32 0.0, %v1534
        %v1601 = vsub.f32 0.0, %v1539
        %v1602 = vsub.f32 0.0, %v1544
        %v1603 = vsub.f32 0.0, %v1549
        %v1604 = vsub.f32 0.0, %v1554
        %v1605 = vsub.f32 0.0, %v1559
        %v1606 = vsub.f32 0.0, %v1564
        %v1607 = vsub.f32 0.0, %v1569
        %v1608 = vsub.f32 0.0, %v1574
        %v1609 = vmul.f32 %v1577, 1.442695
        %v1610 = vpow.pop %v1609
        %v1611 = vmul.f32 %v1578, 1.442695
        %v1612 = vpow.pop %v1611
        %v1613 = vmul.f32 %v1579, 1.442695
        %v1614 = vpow.pop %v1613
        %v1615 = vmul.f32 %v1580, 1.442695
        %v1616 = vpow.pop %v1615
        %v1617 = vmul.f32 %v1581, 1.442695
        %v1618 = vpow.pop %v1617
        %v1619 = vmul.f32 %v1582, 1.442695
        %v1620 = vpow.pop %v1619
        %v1621 = vmul.f32 %v1583, 1.442695
        %v1622 = vpow.pop %v1621
        %v1623 = vmul.f32 %v1584, 1.442695
        %v1624 = vpow.pop %v1623
        %v1625 = vmul.f32 %v1585, 1.442695
        %v1626 = vpow.pop %v1625
        %v1627 = vmul.f32 %v1586, 1.442695
        %v1628 = vpow.pop %v1627
        %v1629 = vmul.f32 %v1587, 1.442695
        %v1630 = vpow.pop %v1629
        %v1631 = vmul.f32 %v1588, 1.442695
        %v1632 = vpow.pop %v1631
        %v1633 = vmul.f32 %v1589, 1.442695
        %v1634 = vpow.pop %v1633
        %v1635 = vmul.f32 %v1590, 1.442695
        %v1636 = vpow.pop %v1635
        %v1637 = vmul.f32 %v1591, 1.442695
        %v1638 = vpow.pop %v1637
        %v1639 = vmul.f32 %v1592, 1.442695
        %v1640 = vpow.pop %v1639
        %v1641 = vmul.f32 %v1593, 1.442695
        %v1642 = vpow.pop %v1641
        %v1643 = vmul.f32 %v1594, 1.442695
        %v1644 = vpow.pop %v1643
        %v1645 = vmul.f32 %v1595, 1.442695
        %v1646 = vpow.pop %v1645
        %v1647 = vmul.f32 %v1596, 1.442695
        %v1648 = vpow.pop %v1647
        %v1649 = vmul.f32 %v1597, 1.442695
        %v1650 = vpow.pop %v1649
        %v1651 = vmul.f32 %v1598, 1.442695
        %v1652 = vpow.pop %v1651
        %v1653 = vmul.f32 %v1599, 1.442695
        %v1654 = vpow.pop %v1653
        %v1655 = vmul.f32 %v1600, 1.442695
        %v1656 = vpow.pop %v1655
        %v1657 = vmul.f32 %v1601, 1.442695
        %v1658 = vpow.pop %v1657
        %v1659 = vmul.f32 %v1602, 1.442695
        %v1660 = vpow.pop %v1659
        %v1661 = vmul.f32 %v1603, 1.442695
        %v1662 = vpow.pop %v1661
        %v1663 = vmul.f32 %v1604, 1.442695
        %v1664 = vpow.pop %v1663
        %v1665 = vmul.f32 %v1605, 1.442695
        %v1666 = vpow.pop %v1665
        %v1667 = vmul.f32 %v1606, 1.442695
        %v1668 = vpow.pop %v1667
        %v1669 = vmul.f32 %v1607, 1.442695
        %v1670 = vpow.pop %v1669
        %v1671 = vmul.f32 %v1608, 1.442695
        %v1672 = vpow.pop %v1671
        %v1673 = vadd.f32 %v1610, 1.0
        %v1674 = vadd.f32 %v1612, 1.0
        %v1675 = vadd.f32 %v1614, 1.0
        %v1676 = vadd.f32 %v1616, 1.0
        %v1677 = vadd.f32 %v1618, 1.0
        %v1678 = vadd.f32 %v1620, 1.0
        %v1679 = vadd.f32 %v1622, 1.0
        %v1680 = vadd.f32 %v1624, 1.0
        %v1681 = vadd.f32 %v1626, 1.0
        %v1682 = vadd.f32 %v1628, 1.0
        %v1683 = vadd.f32 %v1630, 1.0
        %v1684 = vadd.f32 %v1632, 1.0
        %v1685 = vadd.f32 %v1634, 1.0
        %v1686 = vadd.f32 %v1636, 1.0
        %v1687 = vadd.f32 %v1638, 1.0
        %v1688 = vadd.f32 %v1640, 1.0
        %v1689 = vadd.f32 %v1642, 1.0
        %v1690 = vadd.f32 %v1644, 1.0
        %v1691 = vadd.f32 %v1646, 1.0
        %v1692 = vadd.f32 %v1648, 1.0
        %v1693 = vadd.f32 %v1650, 1.0
        %v1694 = vadd.f32 %v1652, 1.0
        %v1695 = vadd.f32 %v1654, 1.0
        %v1696 = vadd.f32 %v1656, 1.0
        %v1697 = vadd.f32 %v1658, 1.0
        %v1698 = vadd.f32 %v1660, 1.0
        %v1699 = vadd.f32 %v1662, 1.0
        %v1700 = vadd.f32 %v1664, 1.0
        %v1701 = vadd.f32 %v1666, 1.0
        %v1702 = vadd.f32 %v1668, 1.0
        %v1703 = vadd.f32 %v1670, 1.0
        %v1704 = vadd.f32 %v1672, 1.0
        %v1705 = vrcp.pop %v1673
        %v1706 = vrcp.pop %v1674
        %v1707 = vrcp.pop %v1675
        %v1708 = vrcp.pop %v1676
        %v1709 = vrcp.pop %v1677
        %v1710 = vrcp.pop %v1678
        %v1711 = vrcp.pop %v1679
        %v1712 = vrcp.pop %v1680
        %v1713 = vrcp.pop %v1681
        %v1714 = vrcp.pop %v1682
        %v1715 = vrcp.pop %v1683
        %v1716 = vrcp.pop %v1684
        %v1717 = vrcp.pop %v1685
        %v1718 = vrcp.pop %v1686
        %v1719 = vrcp.pop %v1687
        %v1720 = vrcp.pop %v1688
        %v1721 = vrcp.pop %v1689
        %v1722 = vrcp.pop %v1690
        %v1723 = vrcp.pop %v1691
        %v1724 = vrcp.pop %v1692
        %v1725 = vrcp.pop %v1693
        %v1726 = vrcp.pop %v1694
        %v1727 = vrcp.pop %v1695
        %v1728 = vrcp.pop %v1696
        %v1729 = vrcp.pop %v1697
        %v1730 = vrcp.pop %v1698
        %v1731 = vrcp.pop %v1699
        %v1732 = vrcp.pop %v1700
        %v1733 = vrcp.pop %v1701
        %v1734 = vrcp.pop %v1702
        %v1735 = vrcp.pop %v1703
        %v1736 = vrcp.pop %v1704
        %v1737 = vld [vmem:[#allocation7] sm:$0xff]
        %v1738 = vld [vmem:[#allocation7 + $0x8] sm:$0xff]
        %v1739 = vld [vmem:[#allocation7 + $0x10] sm:$0xff]
        %v1740 = vld [vmem:[#allocation7 + $0x18] sm:$0xff]
        %v1741 = vld [vmem:[#allocation7 + $0x20] sm:$0xff]
        %v1742 = vld [vmem:[#allocation7 + $0x28] sm:$0xff]
        %v1743 = vld [vmem:[#allocation7 + $0x30] sm:$0xff]
        %v1744 = vld [vmem:[#allocation7 + $0x38] sm:$0xff]
        %v1745 = vld [vmem:[#allocation8] sm:$0x1]
        %v1747 = vlaneseq
        %v1748 = vshrl.u32 %v1747, 7
        %v1749 = vsub.s32 0, %v1748
        %v1750 = vrot.slane %v1745, %v1749
        %vm1752 = vcmask 523264
        %v1754 = vsel %vm1752, %v1705, 0
        %v1757 = vsel %vm1752, %v1706, 0
        %v1760 = vsel %vm1752, %v1707, 0
        %v1763 = vsel %vm1752, %v1708, 0
        %v1766 = vsel %vm1752, %v1709, 0
        %v1769 = vsel %vm1752, %v1710, 0
        %v1772 = vsel %vm1752, %v1711, 0
        %v1775 = vsel %vm1752, %v1712, 0
        %v1778 = vsel %vm1752, %v1713, 0
        %v1781 = vsel %vm1752, %v1714, 0
        %v1784 = vsel %vm1752, %v1715, 0
        %v1787 = vsel %vm1752, %v1716, 0
        %v1790 = vsel %vm1752, %v1717, 0
        %v1793 = vsel %vm1752, %v1718, 0
        %v1796 = vsel %vm1752, %v1719, 0
        %v1799 = vsel %vm1752, %v1720, 0
        %v1802 = vsel %vm1752, %v1721, 0
        %v1805 = vsel %vm1752, %v1722, 0
        %v1808 = vsel %vm1752, %v1723, 0
        %v1811 = vsel %vm1752, %v1724, 0
        %v1814 = vsel %vm1752, %v1725, 0
        %v1817 = vsel %vm1752, %v1726, 0
        %v1820 = vsel %vm1752, %v1727, 0
        %v1823 = vsel %vm1752, %v1728, 0
        %v1826 = vsel %vm1752, %v1729, 0
        %v1829 = vsel %vm1752, %v1730, 0
        %v1832 = vsel %vm1752, %v1731, 0
        %v1835 = vsel %vm1752, %v1732, 0
        %v1838 = vsel %vm1752, %v1733, 0
        %v1841 = vsel %vm1752, %v1734, 0
        %v1844 = vsel %vm1752, %v1735, 0
        %v1847 = vsel %vm1752, %v1736, 0
        %1849 = vmatprep.subr.mxu0 0.0
        %1850 = vmatpush1.msra.mxu0 0.0
        %1851 = vmatprep.subr.mxu0 0.0
        %1852 = vmatpush1.msra.mxu0 0.0
        %1853 = vmatprep.subr.mxu0 0.0
        %1854 = vmatpush1.msra.mxu0 0.0
        %1855 = vmatprep.subr.mxu0 0.0
        %1856 = vmatpush1.msra.mxu0 0.0
        %1857 = vmatprep.subr.mxu0 0.0
        %1858 = vmatpush1.msra.mxu0 0.0
        %1859 = vmatprep.subr.mxu0 0.0
        %1860 = vmatpush1.msra.mxu0 0.0
        %1861 = vmatprep.subr.mxu0 0.0
        %1862 = vmatpush1.msra.mxu0 0.0
        %1863 = vmatprep.subr.mxu0 0.0
        %1864 = vmatpush1.msra.mxu0 0.0
        %1865 = vmatprep.subr.mxu0 0.0
        %1866 = vmatpush1.msra.mxu0 %v1744
        %1867 = vmatprep.subr.mxu0 0.0
        %1868 = vmatpush1.msra.mxu0 %v1743
        %1869 = vmatprep.subr.mxu0 0.0
        %1870 = vmatpush1.msra.mxu0 %v1742
        %1871 = vmatprep.subr.mxu0 0.0
        %1872 = vmatpush1.msra.mxu0 %v1741
        %1873 = vmatprep.subr.mxu0 0.0
        %1874 = vmatpush1.msra.mxu0 %v1740
        %1875 = vmatprep.subr.mxu0 0.0
        %1876 = vmatpush1.msra.mxu0 %v1739
        %1877 = vmatprep.subr.mxu0 0.0
        %1878 = vmatpush1.msra.mxu0 %v1738
        %1879 = vmatprep.subr.mxu0 0.0
        %1880 = vmatpush1.msra.mxu0 %v1737
        %1881 = vmatprep.subr.mxu0 0.0
        %1882 = vmatpush2.msra.mxu0 0.0
        %1883 = vmatprep.subr.mxu0 0.0
        %1884 = vmatpush2.msra.mxu0 0.0
        %1885 = vmatprep.subr.mxu0 0.0
        %1886 = vmatpush2.msra.mxu0 0.0
        %1887 = vmatprep.subr.mxu0 0.0
        %1888 = vmatpush2.msra.mxu0 0.0
        %1889 = vmatprep.subr.mxu0 0.0
        %1890 = vmatpush2.msra.mxu0 0.0
        %1891 = vmatprep.subr.mxu0 0.0
        %1892 = vmatpush2.msra.mxu0 0.0
        %1893 = vmatprep.subr.mxu0 0.0
        %1894 = vmatpush2.msra.mxu0 0.0
        %1895 = vmatprep.subr.mxu0 0.0
        %1896 = vmatpush2.msra.mxu0 0.0
        %1897 = vmatprep.subr.mxu0 0.0
        %1898 = vmatpush2.msra.mxu0 0.0
        %1899 = vmatprep.subr.mxu0 0.0
        %1900 = vmatpush2.msra.mxu0 0.0
        %1901 = vmatprep.subr.mxu0 0.0
        %1902 = vmatpush2.msra.mxu0 0.0
        %1903 = vmatprep.subr.mxu0 0.0
        %1904 = vmatpush2.msra.mxu0 0.0
        %1905 = vmatprep.subr.mxu0 0.0
        %1906 = vmatpush2.msra.mxu0 0.0
        %1907 = vmatprep.subr.mxu0 0.0
        %1908 = vmatpush2.msra.mxu0 0.0
        %1909 = vmatprep.subr.mxu0 0.0
        %1910 = vmatpush2.msra.mxu0 0.0
        %1911 = vmatprep.subr.mxu0 0.0
        %1912 = vmatpush2.msra.mxu0 0.0
        %1913 = vmatprep.mubr.f32.mxu0 0.0
        %1914 = vmatmul.mubr.f32.gmra.mxu0 %v1754
        %v1915 = vpop.f32.mrf.mxu0
        %v1916 = vadd.f32 %v1750, %v1915
        %v1917 = vpop.f32.mrf.mxu0
        %1918 = vmatprep.mubr.f32.mxu0 0.0
        %1919 = vmatmul.mubr.f32.gmra.mxu0 %v1757
        %v1920 = vpop.f32.mrf.mxu0
        %v1921 = vadd.f32 %v1750, %v1920
        %v1922 = vpop.f32.mrf.mxu0
        %1923 = vmatprep.mubr.f32.mxu0 0.0
        %1924 = vmatmul.mubr.f32.gmra.mxu0 %v1760
        %v1925 = vpop.f32.mrf.mxu0
        %v1926 = vadd.f32 %v1750, %v1925
        %v1927 = vpop.f32.mrf.mxu0
        %1928 = vmatprep.mubr.f32.mxu0 0.0
        %1929 = vmatmul.mubr.f32.gmra.mxu0 %v1763
        %v1930 = vpop.f32.mrf.mxu0
        %v1931 = vadd.f32 %v1750, %v1930
        %v1932 = vpop.f32.mrf.mxu0
        %1933 = vmatprep.mubr.f32.mxu0 0.0
        %1934 = vmatmul.mubr.f32.gmra.mxu0 %v1766
        %v1935 = vpop.f32.mrf.mxu0
        %v1936 = vadd.f32 %v1750, %v1935
        %v1937 = vpop.f32.mrf.mxu0
        %1938 = vmatprep.mubr.f32.mxu0 0.0
        %1939 = vmatmul.mubr.f32.gmra.mxu0 %v1769
        %v1940 = vpop.f32.mrf.mxu0
        %v1941 = vadd.f32 %v1750, %v1940
        %v1942 = vpop.f32.mrf.mxu0
        %1943 = vmatprep.mubr.f32.mxu0 0.0
        %1944 = vmatmul.mubr.f32.gmra.mxu0 %v1772
        %v1945 = vpop.f32.mrf.mxu0
        %v1946 = vadd.f32 %v1750, %v1945
        %v1947 = vpop.f32.mrf.mxu0
        %1948 = vmatprep.mubr.f32.mxu0 0.0
        %1949 = vmatmul.mubr.f32.gmra.mxu0 %v1775
        %v1950 = vpop.f32.mrf.mxu0
        %v1951 = vadd.f32 %v1750, %v1950
        %v1952 = vpop.f32.mrf.mxu0
        %1953 = vmatprep.mubr.f32.mxu0 0.0
        %1954 = vmatmul.mubr.f32.gmra.mxu0 %v1778
        %v1955 = vpop.f32.mrf.mxu0
        %v1956 = vadd.f32 %v1750, %v1955
        %v1957 = vpop.f32.mrf.mxu0
        %1958 = vmatprep.mubr.f32.mxu0 0.0
        %1959 = vmatmul.mubr.f32.gmra.mxu0 %v1781
        %v1960 = vpop.f32.mrf.mxu0
        %v1961 = vadd.f32 %v1750, %v1960
        %v1962 = vpop.f32.mrf.mxu0
        %1963 = vmatprep.mubr.f32.mxu0 0.0
        %1964 = vmatmul.mubr.f32.gmra.mxu0 %v1784
        %v1965 = vpop.f32.mrf.mxu0
        %v1966 = vadd.f32 %v1750, %v1965
        %v1967 = vpop.f32.mrf.mxu0
        %1968 = vmatprep.mubr.f32.mxu0 0.0
        %1969 = vmatmul.mubr.f32.gmra.mxu0 %v1787
        %v1970 = vpop.f32.mrf.mxu0
        %v1971 = vadd.f32 %v1750, %v1970
        %v1972 = vpop.f32.mrf.mxu0
        %1973 = vmatprep.mubr.f32.mxu0 0.0
        %1974 = vmatmul.mubr.f32.gmra.mxu0 %v1790
        %v1975 = vpop.f32.mrf.mxu0
        %v1976 = vadd.f32 %v1750, %v1975
        %v1977 = vpop.f32.mrf.mxu0
        %1978 = vmatprep.mubr.f32.mxu0 0.0
        %1979 = vmatmul.mubr.f32.gmra.mxu0 %v1793
        %v1980 = vpop.f32.mrf.mxu0
        %v1981 = vadd.f32 %v1750, %v1980
        %v1982 = vpop.f32.mrf.mxu0
        %1983 = vmatprep.mubr.f32.mxu0 0.0
        %1984 = vmatmul.mubr.f32.gmra.mxu0 %v1796
        %v1985 = vpop.f32.mrf.mxu0
        %v1986 = vadd.f32 %v1750, %v1985
        %v1987 = vpop.f32.mrf.mxu0
        %1988 = vmatprep.mubr.f32.mxu0 0.0
        %1989 = vmatmul.mubr.f32.gmra.mxu0 %v1799
        %v1990 = vpop.f32.mrf.mxu0
        %v1991 = vadd.f32 %v1750, %v1990
        %v1992 = vpop.f32.mrf.mxu0
        %1993 = vmatprep.mubr.f32.mxu0 0.0
        %1994 = vmatmul.mubr.f32.gmra.mxu0 %v1802
        %v1995 = vpop.f32.mrf.mxu0
        %v1996 = vadd.f32 %v1750, %v1995
        %v1997 = vpop.f32.mrf.mxu0
        %1998 = vmatprep.mubr.f32.mxu0 0.0
        %1999 = vmatmul.mubr.f32.gmra.mxu0 %v1805
        %v2000 = vpop.f32.mrf.mxu0
        %v2001 = vadd.f32 %v1750, %v2000
        %v2002 = vpop.f32.mrf.mxu0
        %2003 = vmatprep.mubr.f32.mxu0 0.0
        %2004 = vmatmul.mubr.f32.gmra.mxu0 %v1808
        %v2005 = vpop.f32.mrf.mxu0
        %v2006 = vadd.f32 %v1750, %v2005
        %v2007 = vpop.f32.mrf.mxu0
        %2008 = vmatprep.mubr.f32.mxu0 0.0
        %2009 = vmatmul.mubr.f32.gmra.mxu0 %v1811
        %v2010 = vpop.f32.mrf.mxu0
        %v2011 = vadd.f32 %v1750, %v2010
        %v2012 = vpop.f32.mrf.mxu0
        %2013 = vmatprep.mubr.f32.mxu0 0.0
        %2014 = vmatmul.mubr.f32.gmra.mxu0 %v1814
        %v2015 = vpop.f32.mrf.mxu0
        %v2016 = vadd.f32 %v1750, %v2015
        %v2017 = vpop.f32.mrf.mxu0
        %2018 = vmatprep.mubr.f32.mxu0 0.0
        %2019 = vmatmul.mubr.f32.gmra.mxu0 %v1817
        %v2020 = vpop.f32.mrf.mxu0
        %v2021 = vadd.f32 %v1750, %v2020
        %v2022 = vpop.f32.mrf.mxu0
        %2023 = vmatprep.mubr.f32.mxu0 0.0
        %2024 = vmatmul.mubr.f32.gmra.mxu0 %v1820
        %v2025 = vpop.f32.mrf.mxu0
        %v2026 = vadd.f32 %v1750, %v2025
        %v2027 = vpop.f32.mrf.mxu0
        %2028 = vmatprep.mubr.f32.mxu0 0.0
        %2029 = vmatmul.mubr.f32.gmra.mxu0 %v1823
        %v2030 = vpop.f32.mrf.mxu0
        %v2031 = vadd.f32 %v1750, %v2030
        %v2032 = vpop.f32.mrf.mxu0
        %2033 = vmatprep.mubr.f32.mxu0 0.0
        %2034 = vmatmul.mubr.f32.gmra.mxu0 %v1826
        %v2035 = vpop.f32.mrf.mxu0
        %v2036 = vadd.f32 %v1750, %v2035
        %v2037 = vpop.f32.mrf.mxu0
        %2038 = vmatprep.mubr.f32.mxu0 0.0
        %2039 = vmatmul.mubr.f32.gmra.mxu0 %v1829
        %v2040 = vpop.f32.mrf.mxu0
        %v2041 = vadd.f32 %v1750, %v2040
        %v2042 = vpop.f32.mrf.mxu0
        %2043 = vmatprep.mubr.f32.mxu0 0.0
        %2044 = vmatmul.mubr.f32.gmra.mxu0 %v1832
        %v2045 = vpop.f32.mrf.mxu0
        %v2046 = vadd.f32 %v1750, %v2045
        %v2047 = vpop.f32.mrf.mxu0
        %2048 = vmatprep.mubr.f32.mxu0 0.0
        %2049 = vmatmul.mubr.f32.gmra.mxu0 %v1835
        %v2050 = vpop.f32.mrf.mxu0
        %v2051 = vadd.f32 %v1750, %v2050
        %v2052 = vpop.f32.mrf.mxu0
        %2053 = vmatprep.mubr.f32.mxu0 0.0
        %2054 = vmatmul.mubr.f32.gmra.mxu0 %v1838
        %v2055 = vpop.f32.mrf.mxu0
        %v2056 = vadd.f32 %v1750, %v2055
        %v2057 = vpop.f32.mrf.mxu0
        %2058 = vmatprep.mubr.f32.mxu0 0.0
        %2059 = vmatmul.mubr.f32.gmra.mxu0 %v1841
        %v2060 = vpop.f32.mrf.mxu0
        %v2061 = vadd.f32 %v1750, %v2060
        %v2062 = vpop.f32.mrf.mxu0
        %2063 = vmatprep.mubr.f32.mxu0 0.0
        %2064 = vmatmul.mubr.f32.gmra.mxu0 %v1844
        %v2065 = vpop.f32.mrf.mxu0
        %v2066 = vadd.f32 %v1750, %v2065
        %v2067 = vpop.f32.mrf.mxu0
        %2068 = vmatprep.mubr.f32.mxu0 0.0
        %2069 = vmatmul.mubr.f32.gmra.mxu0 %v1847
        %v2070 = vpop.f32.mrf.mxu0
        %v2071 = vadd.f32 %v1750, %v2070
        %v2072 = vpop.f32.mrf.mxu0
        %2073 = vdwg.mxu0
        %2074 = vst [vmem:[%s283] sm:$0xff] %v1916
        %2075 = vst [vmem:[%s283 + $0x8] sm:$0xff] %v1921
        %2076 = vst [vmem:[%s283 + $0x10] sm:$0xff] %v1926
        %2077 = vst [vmem:[%s283 + $0x18] sm:$0xff] %v1931
        %2078 = vst [vmem:[%s283 + $0x20] sm:$0xff] %v1936
        %2079 = vst [vmem:[%s283 + $0x28] sm:$0xff] %v1941
        %2080 = vst [vmem:[%s283 + $0x30] sm:$0xff] %v1946
        %2081 = vst [vmem:[%s283 + $0x38] sm:$0xff] %v1951
        %2082 = vst [vmem:[%s283 + $0x40] sm:$0xff] %v1956
        %2083 = vst [vmem:[%s283 + $0x48] sm:$0xff] %v1961
        %2084 = vst [vmem:[%s283 + $0x50] sm:$0xff] %v1966
        %2085 = vst [vmem:[%s283 + $0x58] sm:$0xff] %v1971
        %2086 = vst [vmem:[%s283 + $0x60] sm:$0xff] %v1976
        %2087 = vst [vmem:[%s283 + $0x68] sm:$0xff] %v1981
        %2088 = vst [vmem:[%s283 + $0x70] sm:$0xff] %v1986
        %2089 = vst [vmem:[%s283 + $0x78] sm:$0xff] %v1991
        %2090 = vst [vmem:[%s283 + $0x80] sm:$0xff] %v1996
        %2091 = vst [vmem:[%s283 + $0x88] sm:$0xff] %v2001
        %2092 = vst [vmem:[%s283 + $0x90] sm:$0xff] %v2006
        %2093 = vst [vmem:[%s283 + $0x98] sm:$0xff] %v2011
        %2094 = vst [vmem:[%s283 + $0xa0] sm:$0xff] %v2016
        %2095 = vst [vmem:[%s283 + $0xa8] sm:$0xff] %v2021
        %2096 = vst [vmem:[%s283 + $0xb0] sm:$0xff] %v2026
        %2097 = vst [vmem:[%s283 + $0xb8] sm:$0xff] %v2031
        %2098 = vst [vmem:[%s283 + $0xc0] sm:$0xff] %v2036
        %2099 = vst [vmem:[%s283 + $0xc8] sm:$0xff] %v2041
        %2100 = vst [vmem:[%s283 + $0xd0] sm:$0xff] %v2046
        %2101 = vst [vmem:[%s283 + $0xd8] sm:$0xff] %v2051
        %2102 = vst [vmem:[%s283 + $0xe0] sm:$0xff] %v2056
        %2103 = vst [vmem:[%s283 + $0xe8] sm:$0xff] %v2061
        %2104 = vst [vmem:[%s283 + $0xf0] sm:$0xff] %v2066
        %2105 = vst [vmem:[%s283 + $0xf8] sm:$0xff] %v2071
        %s2106 = sand.u32 %s142, 1
        %s2107 = scalar_lea.sflag [#allocation4], %s2106
        %s2108 = sand.u32 %s142, 1
        %s2109 = smul.addr %s2108, 256
        %s2110 = scalar_lea.vmem [#allocation10], %s2109
        // Predicated region
        $region57: #{tpu_custom_call.1} parent=39 // pred_check
          %p2111 = pneg %p152
        $region58: #{tpu_custom_call.1} parent=39 // pred_check_branch
          %2113 = sbr.rel (%p2111) target = $region60
        $region59: #{tpu_custom_call.1} parent=39 // pred_region
          %s2114 = smul.u32 32, %s24
          %s2116 = ssub.s32 4096, 4096
          %2117 = vsyncadd %s2107, %s2116
          %s2118 = smul.addr %s2114, 128
          %s2119 = scalar_lea.hbm %s5, %s2118
          %s2120 = sshll.u32 %s2110, 4
          %s2121 = int_to_ptr.vmem [resolvable:$true] %s2120
          %2126 = dma.vmem_to_hbm [thread:$0]  %s2121, 4096, %s2119, %s2107, 128, 128, 8
        $region60: #{tpu_custom_call.1} parent=39 // pred_fallthru
          _
      $region40: #{tpu_custom_call.1} parent=5 // pred_fallthru
        _
      %p2127 = scmp.le.s32.totalorder 2, %s19
      // Predicated region
      $region61: #{tpu_custom_call.1} parent=5 // pred_check
        %p2128 = pneg %p2127
      $region62: #{tpu_custom_call.1} parent=5 // pred_check_branch
        %2130 = sbr.rel (%p2128) target = $region64
      $region63: #{tpu_custom_call.1} parent=5 // pred_region
        %s2131 = ssub.s32 %s19, 2
        // Predicated region
        $region65: #{tpu_custom_call.1} parent=63 // pred_check
          %p2132 = pneg %p158
        $region66: #{tpu_custom_call.1} parent=63 // pred_check_branch
          %2134 = sbr.rel (%p2132) target = $region68
        $region67: #{tpu_custom_call.1} parent=63 // pred_region
          %s2135 = sand.u32 %s143, 1
          %s2136 = scalar_lea.sflag [#allocation4], %s2135
          %s2137 = sand.u32 %s143, 1
          %s2138 = smul.addr %s2137, 256
          %s2139 = scalar_lea.vmem [#allocation10], %s2138
          %2140 = dma.done %s2136, 4096
        $region68: #{tpu_custom_call.1} parent=63 // pred_fallthru
          _
      $region64: #{tpu_custom_call.1} parent=5 // pred_fallthru
        _
    $region6: #{tpu_custom_call.1} parent=1 // loop_footer
      %s23 = sadd.s32 1, %s19
    $region7: #{tpu_custom_call.1} parent=1 // loop_footer_branch
      %18 = sbr.rel target = $region3
    $region8: #{tpu_custom_call.1} parent=1 // loop_exit
      _
    %2141 = vsyncpa [#allocation3], 1
    %s2142 = scalar_lea.sflag [#allocation3], 1
    %2143 = vsyncpa %s2142, 1
    %2144 = vsyncpa [#allocation6], 1
    %2145 = vsyncpa [#allocation9], 1
    %2146 = vsyncpa [#allocation4], 1
    %s2147 = scalar_lea.sflag [#allocation4], 1
    %2148 = vsyncpa %s2147, 1

</llo_original>
